<compile_context>
chip_gen: v5e
topology: v5e:2x2
jax: 0.10.0
libtpu: 0.0.40
codegen_flags: <defaults>
</compile_context>

<pallas_src>
import jax
import jax.numpy as jnp
from jax.experimental import pallas as pl
from jax.experimental.pallas import tpu as pltpu

N_EMBD = 384
NUM_HEADS = 6
HEAD_SIZE = N_EMBD // NUM_HEADS   # 64
BLOCK_SIZE = 256                  # causal-mask upper bound (T <= BLOCK_SIZE)


def fused_mha_kernel(x_ref, wk_ref, wv_ref, wp_ref, bp_ref, o_ref):
    # x_ref : (1, T, C)
    # wk_ref/wv_ref : (C, H*Dh)   (all heads flattened, grid-constant -> stay resident)
    # wp_ref: (H*Dh, E)           bp_ref: (1, E)
    # o_ref : (1, T, E)           lane-dense output (last dim = 384)
    x = x_ref[0]                                   # (T, C)
    T = x.shape[0]

    # All-head K / V with single wide matmuls (MXU sees N = 384).
    k_all = jnp.dot(x, wk_ref[...], preferred_element_type=jnp.float32)   # (T, H*Dh)
    v_all = jnp.dot(x, wv_ref[...], preferred_element_type=jnp.float32)   # (T, H*Dh)
    # NOTE: q == k (reference uses self.key for the query); query weights unused.

    # Causal additive mask, computed once and reused by every head.
    row = jax.lax.broadcasted_iota(jnp.int32, (T, T), 0)
    col = jax.lax.broadcasted_iota(jnp.int32, (T, T), 1)
    neg_bias = jnp.where(col <= row, 0.0, -1e30).astype(jnp.float32)      # (T, T)

    scale = HEAD_SIZE ** -0.5
    outs = []
    for h in range(NUM_HEADS):                      # static loop (H = 6)
        lo = h * HEAD_SIZE
        hi = lo + HEAD_SIZE
        k_h = k_all[:, lo:hi]                       # (T, Dh)
        v_h = v_all[:, lo:hi]                       # (T, Dh)

        # scale one operand: T*Dh multiplies instead of T*T on the scores.
        s = jnp.dot(k_h * scale, k_h.T,
                    preferred_element_type=jnp.float32) + neg_bias        # (T, T)

        # softmax over last axis (EUP reciprocal for the denominator).
        m = jnp.max(s, axis=-1, keepdims=True)
        e = jnp.exp(s - m)
        p = e * pl.reciprocal(jnp.sum(e, axis=-1, keepdims=True), approx=True)

        outs.append(jnp.dot(p, v_h, preferred_element_type=jnp.float32))  # (T, Dh)

    # Concat heads in VMEM (matches torch.cat(..., dim=-1) ordering), then fused
    # output projection + bias: one (T,384)@(384,384) matmul, one HBM write.
    concat = jnp.concatenate(outs, axis=-1)                               # (T, H*Dh)
    y = jnp.dot(concat, wp_ref[...], preferred_element_type=jnp.float32)
    y = y + bp_ref[...]
    o_ref[0] = y.astype(o_ref.dtype)
    # final dropout = identity (eval mode)


def multi_head_attention(x, wk, wv, wp, bp):
    """x: (B,T,C); wk/wv: (H,C,Dh); wp: (H*Dh,E); bp: (1,E) -> (B,T,E)."""
    B, T, C = x.shape
    H, _, Dh = wk.shape
    E = wp.shape[1]

    # Flatten per-head weights to (C, H*Dh), preserving head order so that
    # x @ wk_flat == concat_h(x @ wk[h]) along the feature axis.
    wk_flat = jnp.transpose(wk, (1, 0, 2)).reshape(C, H * Dh)
    wv_flat = jnp.transpose(wv, (1, 0, 2)).reshape(C, H * Dh)

    return pl.pallas_call(
        fused_mha_kernel,
        out_shape=jax.ShapeDtypeStruct((B, T, E), jnp.float32),
        grid_spec=pltpu.PrefetchScalarGridSpec(
            num_scalar_prefetch=0,
            grid=(B,),
            in_specs=[
                pl.BlockSpec((1, T, C), lambda b: (b, 0, 0)),
                pl.BlockSpec((C, H * Dh), lambda b: (0, 0)),   # grid-constant
                pl.BlockSpec((C, H * Dh), lambda b: (0, 0)),   # grid-constant
                pl.BlockSpec((H * Dh, E), lambda b: (0, 0)),   # grid-constant
                pl.BlockSpec((1, E), lambda b: (0, 0)),        # grid-constant
            ],
            out_specs=pl.BlockSpec((1, T, E), lambda b: (b, 0, 0)),
        ),
        compiler_params=pltpu.CompilerParams(
            dimension_semantics=("parallel",)),
    )(x, wk_flat, wv_flat, wp, bp)


def reference(x, wk, wv, wp, bp):
    """Pure-JAX reference mirroring the PyTorch forward (eval mode)."""
    B, T, C = x.shape
    k = jnp.einsum('btc,hcd->bhtd', x, wk)
    q = k                                           # q uses key layer in reference
    v = jnp.einsum('btc,hcd->bhtd', x, wv)
    s = jnp.einsum('bhtd,bhsd->bhts', q, k) * (HEAD_SIZE ** -0.5)
    mask = jnp.tril(jnp.ones((T, T), dtype=bool))
    s = jnp.where(mask, s, -jnp.inf)
    p = jax.nn.softmax(s, axis=-1)
    o = jnp.einsum('bhts,bhsd->bhtd', p, v)
    concat = jnp.transpose(o, (0, 2, 1, 3)).reshape(B, T, -1)
    return concat @ wp + bp


if __name__ == "__main__":
    B, T = 2, 8
    key = jax.random.PRNGKey(0)
    kx, kk, kq, kv, kp, kb = jax.random.split(key, 6)

    x = jax.random.normal(kx, (B, T, N_EMBD), dtype=jnp.float32)

    # nn.Linear-style uniform init, U(-1/sqrt(fan_in), 1/sqrt(fan_in))
    lim = 1.0 / (N_EMBD ** 0.5)
    wk = jax.random.uniform(kk, (NUM_HEADS, N_EMBD, HEAD_SIZE), jnp.float32, -lim, lim)
    wq = jax.random.uniform(kq, (NUM_HEADS, N_EMBD, HEAD_SIZE), jnp.float32, -lim, lim)  # unused (q = key(x) in reference)
    wv = jax.random.uniform(kv, (NUM_HEADS, N_EMBD, HEAD_SIZE), jnp.float32, -lim, lim)
    lim_p = 1.0 / ((NUM_HEADS * HEAD_SIZE) ** 0.5)
    wp = jax.random.uniform(kp, (NUM_HEADS * HEAD_SIZE, N_EMBD), jnp.float32, -lim_p, lim_p)
    bp = jax.random.uniform(kb, (1, N_EMBD), jnp.float32, -lim_p, lim_p)

    out = multi_head_attention(x, wk, wv, wp, bp)
    out = jax.block_until_ready(out)

    ref = reference(x, wk, wv, wp, bp)
    assert out.shape == (B, T, N_EMBD)
    # slightly loosened tolerance: pl.reciprocal(approx=True) in the softmax denom
    assert jnp.allclose(out, ref, atol=2e-3, rtol=2e-3), "mismatch vs pure-JAX reference"

    print("KERNEL_OK")
</pallas_src>

<mosaic_0001>
module attributes {stable_mosaic.version = 11 : i64} {
  func.func @fused_mha_kernel(%arg0: i32, %arg1: memref<1x8x384xf32, #tpu.memory_space<vmem>>, %arg2: memref<384x384xf32, #tpu.memory_space<vmem>>, %arg3: memref<384x384xf32, #tpu.memory_space<vmem>>, %arg4: memref<384x384xf32, #tpu.memory_space<vmem>>, %arg5: memref<1x384xf32, #tpu.memory_space<vmem>>, %arg6: memref<1x8x384xf32, #tpu.memory_space<vmem>>) attributes {dimension_semantics = [#tpu.dimension_semantics<parallel>], iteration_bounds = array<i64: 2>, scalar_prefetch = 0 : i64, scratch_operands = 0 : i64, tpu.core_type = #tpu.core_type<tc>, window_params = [{transform_indices = @transform_0, window_bounds = array<i64: 1, 8, 384>}, {pipeline_mode = #tpu.pipeline_mode<synchronous>, transform_indices = @transform_1, window_bounds = array<i64: 384, 384>}, {pipeline_mode = #tpu.pipeline_mode<synchronous>, transform_indices = @transform_2, window_bounds = array<i64: 384, 384>}, {pipeline_mode = #tpu.pipeline_mode<synchronous>, transform_indices = @transform_3, window_bounds = array<i64: 384, 384>}, {pipeline_mode = #tpu.pipeline_mode<synchronous>, transform_indices = @transform_4, window_bounds = array<i64: 1, 384>}, {transform_indices = @transform_5, window_bounds = array<i64: 1, 8, 384>}]} {
    %c0 = arith.constant 0 : index
    %c0_0 = arith.constant 0 : index
    %c0_1 = arith.constant 0 : index
    %0 = vector.load %arg1[%c0, %c0_0, %c0_1] : memref<1x8x384xf32, #tpu.memory_space<vmem>>, vector<1x8x384xf32>
    %1 = vector.shape_cast %0 : vector<1x8x384xf32> to vector<8x384xf32>
    %c0_2 = arith.constant 0 : index
    %c0_3 = arith.constant 0 : index
    %2 = vector.load %arg2[%c0_2, %c0_3] : memref<384x384xf32, #tpu.memory_space<vmem>>, vector<384x384xf32>
    %cst = arith.constant dense<0.000000e+00> : vector<8x384xf32>
    %3 = tpu.matmul %1, %2, %cst {dimension_numbers = #tpu.dot_dimension_numbers<[1], [0], [0], [1], [0, 0, 1, 1], [], []>} : vector<8x384xf32>, vector<384x384xf32>, vector<8x384xf32> -> vector<8x384xf32>
    %c0_4 = arith.constant 0 : index
    %c0_5 = arith.constant 0 : index
    %4 = vector.load %arg3[%c0_4, %c0_5] : memref<384x384xf32, #tpu.memory_space<vmem>>, vector<384x384xf32>
    %cst_6 = arith.constant dense<0.000000e+00> : vector<8x384xf32>
    %5 = tpu.matmul %1, %4, %cst_6 {dimension_numbers = #tpu.dot_dimension_numbers<[1], [0], [0], [1], [0, 0, 1, 1], [], []>} : vector<8x384xf32>, vector<384x384xf32>, vector<8x384xf32> -> vector<8x384xf32>
    %6 = tpu.iota {dimensions = array<i32: 0>} : vector<8x8xi32>
    %7 = tpu.iota {dimensions = array<i32: 1>} : vector<8x8xi32>
    %8 = arith.cmpi sle, %7, %6 : vector<8x8xi32>
    %cst_7 = arith.constant 0.000000e+00 : f32
    %cst_8 = arith.constant -1.000000e+30 : f32
    %9 = vector.broadcast %cst_7 : f32 to vector<8x8xf32>
    %10 = vector.broadcast %cst_8 : f32 to vector<8x8xf32>
    %11 = arith.select %8, %9, %10 : vector<8x8xi1>, vector<8x8xf32>
    %12 = vector.extract_strided_slice %3 {offsets = [0, 0], sizes = [8, 64], strides = [1, 1]} : vector<8x384xf32> to vector<8x64xf32>
    %13 = vector.extract_strided_slice %5 {offsets = [0, 0], sizes = [8, 64], strides = [1, 1]} : vector<8x384xf32> to vector<8x64xf32>
    %cst_9 = arith.constant 1.250000e-01 : f32
    %14 = vector.broadcast %cst_9 : f32 to vector<8x64xf32>
    %15 = arith.mulf %12, %14 : vector<8x64xf32>
    %16 = tpu.transpose %12, [1, 0] : vector<8x64xf32> -> vector<64x8xf32>
    %cst_10 = arith.constant dense<0.000000e+00> : vector<8x8xf32>
    %17 = tpu.matmul %15, %16, %cst_10 {dimension_numbers = #tpu.dot_dimension_numbers<[1], [0], [0], [1], [0, 0, 1, 1], [], []>} : vector<8x64xf32>, vector<64x8xf32>, vector<8x8xf32> -> vector<8x8xf32>
    %18 = arith.addf %17, %11 : vector<8x8xf32>
    %cst_11 = arith.constant dense<0xFF800000> : vector<8xf32>
    %19 = vector.multi_reduction <maximumf>, %18, %cst_11 [1] : vector<8x8xf32> to vector<8xf32>
    %20 = vector.shape_cast %19 : vector<8xf32> to vector<8x1xf32>
    %21 = vector.broadcast %20 : vector<8x1xf32> to vector<8x8xf32>
    %22 = arith.subf %18, %21 : vector<8x8xf32>
    %23 = math.exp %22 : vector<8x8xf32>
    %cst_12 = arith.constant dense<0.000000e+00> : vector<8xf32>
    %24 = vector.multi_reduction <add>, %23, %cst_12 [1] : vector<8x8xf32> to vector<8xf32>
    %25 = vector.shape_cast %24 : vector<8xf32> to vector<8x1xf32>
    %26 = tpu.reciprocal %25 {approx = true} : vector<8x1xf32> -> vector<8x1xf32>
    %27 = vector.broadcast %26 : vector<8x1xf32> to vector<8x8xf32>
    %28 = arith.mulf %23, %27 : vector<8x8xf32>
    %cst_13 = arith.constant dense<0.000000e+00> : vector<8x64xf32>
    %29 = tpu.matmul %28, %13, %cst_13 {dimension_numbers = #tpu.dot_dimension_numbers<[1], [0], [0], [1], [0, 0, 1, 1], [], []>} : vector<8x8xf32>, vector<8x64xf32>, vector<8x64xf32> -> vector<8x64xf32>
    %30 = vector.extract_strided_slice %3 {offsets = [0, 64], sizes = [8, 64], strides = [1, 1]} : vector<8x384xf32> to vector<8x64xf32>
    %31 = vector.extract_strided_slice %5 {offsets = [0, 64], sizes = [8, 64], strides = [1, 1]} : vector<8x384xf32> to vector<8x64xf32>
    %cst_14 = arith.constant 1.250000e-01 : f32
    %32 = vector.broadcast %cst_14 : f32 to vector<8x64xf32>
    %33 = arith.mulf %30, %32 : vector<8x64xf32>
    %34 = tpu.transpose %30, [1, 0] : vector<8x64xf32> -> vector<64x8xf32>
    %cst_15 = arith.constant dense<0.000000e+00> : vector<8x8xf32>
    %35 = tpu.matmul %33, %34, %cst_15 {dimension_numbers = #tpu.dot_dimension_numbers<[1], [0], [0], [1], [0, 0, 1, 1], [], []>} : vector<8x64xf32>, vector<64x8xf32>, vector<8x8xf32> -> vector<8x8xf32>
    %36 = arith.addf %35, %11 : vector<8x8xf32>
    %cst_16 = arith.constant dense<0xFF800000> : vector<8xf32>
    %37 = vector.multi_reduction <maximumf>, %36, %cst_16 [1] : vector<8x8xf32> to vector<8xf32>
    %38 = vector.shape_cast %37 : vector<8xf32> to vector<8x1xf32>
    %39 = vector.broadcast %38 : vector<8x1xf32> to vector<8x8xf32>
    %40 = arith.subf %36, %39 : vector<8x8xf32>
    %41 = math.exp %40 : vector<8x8xf32>
    %cst_17 = arith.constant dense<0.000000e+00> : vector<8xf32>
    %42 = vector.multi_reduction <add>, %41, %cst_17 [1] : vector<8x8xf32> to vector<8xf32>
    %43 = vector.shape_cast %42 : vector<8xf32> to vector<8x1xf32>
    %44 = tpu.reciprocal %43 {approx = true} : vector<8x1xf32> -> vector<8x1xf32>
    %45 = vector.broadcast %44 : vector<8x1xf32> to vector<8x8xf32>
    %46 = arith.mulf %41, %45 : vector<8x8xf32>
    %cst_18 = arith.constant dense<0.000000e+00> : vector<8x64xf32>
    %47 = tpu.matmul %46, %31, %cst_18 {dimension_numbers = #tpu.dot_dimension_numbers<[1], [0], [0], [1], [0, 0, 1, 1], [], []>} : vector<8x8xf32>, vector<8x64xf32>, vector<8x64xf32> -> vector<8x64xf32>
    %48 = vector.extract_strided_slice %3 {offsets = [0, 128], sizes = [8, 64], strides = [1, 1]} : vector<8x384xf32> to vector<8x64xf32>
    %49 = vector.extract_strided_slice %5 {offsets = [0, 128], sizes = [8, 64], strides = [1, 1]} : vector<8x384xf32> to vector<8x64xf32>
    %cst_19 = arith.constant 1.250000e-01 : f32
    %50 = vector.broadcast %cst_19 : f32 to vector<8x64xf32>
    %51 = arith.mulf %48, %50 : vector<8x64xf32>
    %52 = tpu.transpose %48, [1, 0] : vector<8x64xf32> -> vector<64x8xf32>
    %cst_20 = arith.constant dense<0.000000e+00> : vector<8x8xf32>
    %53 = tpu.matmul %51, %52, %cst_20 {dimension_numbers = #tpu.dot_dimension_numbers<[1], [0], [0], [1], [0, 0, 1, 1], [], []>} : vector<8x64xf32>, vector<64x8xf32>, vector<8x8xf32> -> vector<8x8xf32>
    %54 = arith.addf %53, %11 : vector<8x8xf32>
    %cst_21 = arith.constant dense<0xFF800000> : vector<8xf32>
    %55 = vector.multi_reduction <maximumf>, %54, %cst_21 [1] : vector<8x8xf32> to vector<8xf32>
    %56 = vector.shape_cast %55 : vector<8xf32> to vector<8x1xf32>
    %57 = vector.broadcast %56 : vector<8x1xf32> to vector<8x8xf32>
    %58 = arith.subf %54, %57 : vector<8x8xf32>
    %59 = math.exp %58 : vector<8x8xf32>
    %cst_22 = arith.constant dense<0.000000e+00> : vector<8xf32>
    %60 = vector.multi_reduction <add>, %59, %cst_22 [1] : vector<8x8xf32> to vector<8xf32>
    %61 = vector.shape_cast %60 : vector<8xf32> to vector<8x1xf32>
    %62 = tpu.reciprocal %61 {approx = true} : vector<8x1xf32> -> vector<8x1xf32>
    %63 = vector.broadcast %62 : vector<8x1xf32> to vector<8x8xf32>
    %64 = arith.mulf %59, %63 : vector<8x8xf32>
    %cst_23 = arith.constant dense<0.000000e+00> : vector<8x64xf32>
    %65 = tpu.matmul %64, %49, %cst_23 {dimension_numbers = #tpu.dot_dimension_numbers<[1], [0], [0], [1], [0, 0, 1, 1], [], []>} : vector<8x8xf32>, vector<8x64xf32>, vector<8x64xf32> -> vector<8x64xf32>
    %66 = vector.extract_strided_slice %3 {offsets = [0, 192], sizes = [8, 64], strides = [1, 1]} : vector<8x384xf32> to vector<8x64xf32>
    %67 = vector.extract_strided_slice %5 {offsets = [0, 192], sizes = [8, 64], strides = [1, 1]} : vector<8x384xf32> to vector<8x64xf32>
    %cst_24 = arith.constant 1.250000e-01 : f32
    %68 = vector.broadcast %cst_24 : f32 to vector<8x64xf32>
    %69 = arith.mulf %66, %68 : vector<8x64xf32>
    %70 = tpu.transpose %66, [1, 0] : vector<8x64xf32> -> vector<64x8xf32>
    %cst_25 = arith.constant dense<0.000000e+00> : vector<8x8xf32>
    %71 = tpu.matmul %69, %70, %cst_25 {dimension_numbers = #tpu.dot_dimension_numbers<[1], [0], [0], [1], [0, 0, 1, 1], [], []>} : vector<8x64xf32>, vector<64x8xf32>, vector<8x8xf32> -> vector<8x8xf32>
    %72 = arith.addf %71, %11 : vector<8x8xf32>
    %cst_26 = arith.constant dense<0xFF800000> : vector<8xf32>
    %73 = vector.multi_reduction <maximumf>, %72, %cst_26 [1] : vector<8x8xf32> to vector<8xf32>
    %74 = vector.shape_cast %73 : vector<8xf32> to vector<8x1xf32>
    %75 = vector.broadcast %74 : vector<8x1xf32> to vector<8x8xf32>
    %76 = arith.subf %72, %75 : vector<8x8xf32>
    %77 = math.exp %76 : vector<8x8xf32>
    %cst_27 = arith.constant dense<0.000000e+00> : vector<8xf32>
    %78 = vector.multi_reduction <add>, %77, %cst_27 [1] : vector<8x8xf32> to vector<8xf32>
    %79 = vector.shape_cast %78 : vector<8xf32> to vector<8x1xf32>
    %80 = tpu.reciprocal %79 {approx = true} : vector<8x1xf32> -> vector<8x1xf32>
    %81 = vector.broadcast %80 : vector<8x1xf32> to vector<8x8xf32>
    %82 = arith.mulf %77, %81 : vector<8x8xf32>
    %cst_28 = arith.constant dense<0.000000e+00> : vector<8x64xf32>
    %83 = tpu.matmul %82, %67, %cst_28 {dimension_numbers = #tpu.dot_dimension_numbers<[1], [0], [0], [1], [0, 0, 1, 1], [], []>} : vector<8x8xf32>, vector<8x64xf32>, vector<8x64xf32> -> vector<8x64xf32>
    %84 = vector.extract_strided_slice %3 {offsets = [0, 256], sizes = [8, 64], strides = [1, 1]} : vector<8x384xf32> to vector<8x64xf32>
    %85 = vector.extract_strided_slice %5 {offsets = [0, 256], sizes = [8, 64], strides = [1, 1]} : vector<8x384xf32> to vector<8x64xf32>
    %cst_29 = arith.constant 1.250000e-01 : f32
    %86 = vector.broadcast %cst_29 : f32 to vector<8x64xf32>
    %87 = arith.mulf %84, %86 : vector<8x64xf32>
    %88 = tpu.transpose %84, [1, 0] : vector<8x64xf32> -> vector<64x8xf32>
    %cst_30 = arith.constant dense<0.000000e+00> : vector<8x8xf32>
    %89 = tpu.matmul %87, %88, %cst_30 {dimension_numbers = #tpu.dot_dimension_numbers<[1], [0], [0], [1], [0, 0, 1, 1], [], []>} : vector<8x64xf32>, vector<64x8xf32>, vector<8x8xf32> -> vector<8x8xf32>
    %90 = arith.addf %89, %11 : vector<8x8xf32>
    %cst_31 = arith.constant dense<0xFF800000> : vector<8xf32>
    %91 = vector.multi_reduction <maximumf>, %90, %cst_31 [1] : vector<8x8xf32> to vector<8xf32>
    %92 = vector.shape_cast %91 : vector<8xf32> to vector<8x1xf32>
    %93 = vector.broadcast %92 : vector<8x1xf32> to vector<8x8xf32>
    %94 = arith.subf %90, %93 : vector<8x8xf32>
    %95 = math.exp %94 : vector<8x8xf32>
    %cst_32 = arith.constant dense<0.000000e+00> : vector<8xf32>
    %96 = vector.multi_reduction <add>, %95, %cst_32 [1] : vector<8x8xf32> to vector<8xf32>
    %97 = vector.shape_cast %96 : vector<8xf32> to vector<8x1xf32>
    %98 = tpu.reciprocal %97 {approx = true} : vector<8x1xf32> -> vector<8x1xf32>
    %99 = vector.broadcast %98 : vector<8x1xf32> to vector<8x8xf32>
    %100 = arith.mulf %95, %99 : vector<8x8xf32>
    %cst_33 = arith.constant dense<0.000000e+00> : vector<8x64xf32>
    %101 = tpu.matmul %100, %85, %cst_33 {dimension_numbers = #tpu.dot_dimension_numbers<[1], [0], [0], [1], [0, 0, 1, 1], [], []>} : vector<8x8xf32>, vector<8x64xf32>, vector<8x64xf32> -> vector<8x64xf32>
    %102 = vector.extract_strided_slice %3 {offsets = [0, 320], sizes = [8, 64], strides = [1, 1]} : vector<8x384xf32> to vector<8x64xf32>
    %103 = vector.extract_strided_slice %5 {offsets = [0, 320], sizes = [8, 64], strides = [1, 1]} : vector<8x384xf32> to vector<8x64xf32>
    %cst_34 = arith.constant 1.250000e-01 : f32
    %104 = vector.broadcast %cst_34 : f32 to vector<8x64xf32>
    %105 = arith.mulf %102, %104 : vector<8x64xf32>
    %106 = tpu.transpose %102, [1, 0] : vector<8x64xf32> -> vector<64x8xf32>
    %cst_35 = arith.constant dense<0.000000e+00> : vector<8x8xf32>
    %107 = tpu.matmul %105, %106, %cst_35 {dimension_numbers = #tpu.dot_dimension_numbers<[1], [0], [0], [1], [0, 0, 1, 1], [], []>} : vector<8x64xf32>, vector<64x8xf32>, vector<8x8xf32> -> vector<8x8xf32>
    %108 = arith.addf %107, %11 : vector<8x8xf32>
    %cst_36 = arith.constant dense<0xFF800000> : vector<8xf32>
    %109 = vector.multi_reduction <maximumf>, %108, %cst_36 [1] : vector<8x8xf32> to vector<8xf32>
    %110 = vector.shape_cast %109 : vector<8xf32> to vector<8x1xf32>
    %111 = vector.broadcast %110 : vector<8x1xf32> to vector<8x8xf32>
    %112 = arith.subf %108, %111 : vector<8x8xf32>
    %113 = math.exp %112 : vector<8x8xf32>
    %cst_37 = arith.constant dense<0.000000e+00> : vector<8xf32>
    %114 = vector.multi_reduction <add>, %113, %cst_37 [1] : vector<8x8xf32> to vector<8xf32>
    %115 = vector.shape_cast %114 : vector<8xf32> to vector<8x1xf32>
    %116 = tpu.reciprocal %115 {approx = true} : vector<8x1xf32> -> vector<8x1xf32>
    %117 = vector.broadcast %116 : vector<8x1xf32> to vector<8x8xf32>
    %118 = arith.mulf %113, %117 : vector<8x8xf32>
    %cst_38 = arith.constant dense<0.000000e+00> : vector<8x64xf32>
    %119 = tpu.matmul %118, %103, %cst_38 {dimension_numbers = #tpu.dot_dimension_numbers<[1], [0], [0], [1], [0, 0, 1, 1], [], []>} : vector<8x8xf32>, vector<8x64xf32>, vector<8x64xf32> -> vector<8x64xf32>
    %120 = tpu.concatenate %29, %47, %65, %83, %101, %119 in 1 : vector<8x64xf32>, vector<8x64xf32>, vector<8x64xf32>, vector<8x64xf32>, vector<8x64xf32>, vector<8x64xf32> -> vector<8x384xf32>
    %c0_39 = arith.constant 0 : index
    %c0_40 = arith.constant 0 : index
    %121 = vector.load %arg4[%c0_39, %c0_40] : memref<384x384xf32, #tpu.memory_space<vmem>>, vector<384x384xf32>
    %cst_41 = arith.constant dense<0.000000e+00> : vector<8x384xf32>
    %122 = tpu.matmul %120, %121, %cst_41 {dimension_numbers = #tpu.dot_dimension_numbers<[1], [0], [0], [1], [0, 0, 1, 1], [], []>} : vector<8x384xf32>, vector<384x384xf32>, vector<8x384xf32> -> vector<8x384xf32>
    %c0_42 = arith.constant 0 : index
    %c0_43 = arith.constant 0 : index
    %123 = vector.load %arg5[%c0_42, %c0_43] : memref<1x384xf32, #tpu.memory_space<vmem>>, vector<1x384xf32>
    %124 = vector.broadcast %123 : vector<1x384xf32> to vector<8x384xf32>
    %125 = arith.addf %122, %124 : vector<8x384xf32>
    %c0_44 = arith.constant 0 : index
    %c0_45 = arith.constant 0 : index
    %c0_46 = arith.constant 0 : index
    %126 = vector.load %arg6[%c0_44, %c0_45, %c0_46] : memref<1x8x384xf32, #tpu.memory_space<vmem>>, vector<1x8x384xf32>
    %127 = vector.shape_cast %126 : vector<1x8x384xf32> to vector<8x384xf32>
    %128 = vector.shape_cast %125 : vector<8x384xf32> to vector<1x8x384xf32>
    tpu.vector_store %arg6[%c0_44, %c0_45, %c0_46], %128 {strides = array<i32>} : memref<1x8x384xf32, #tpu.memory_space<vmem>>, vector<1x8x384xf32>,
    return
  }
  func.func @transform_0(%arg0: i32) -> (i32, i32, i32) {
    %c0_i32 = arith.constant 0 : i32
    %c0_i32_0 = arith.constant 0 : i32
    %c0_i32_1 = arith.constant 0 : i32
    return %arg0, %c0_i32, %c0_i32_0 : i32, i32, i32
  }
  func.func @transform_1(%arg0: i32) -> (i32, i32) {
    %c0_i32 = arith.constant 0 : i32
    %c0_i32_0 = arith.constant 0 : i32
    %c0_i32_1 = arith.constant 0 : i32
    return %c0_i32, %c0_i32_0 : i32, i32
  }
  func.func @transform_2(%arg0: i32) -> (i32, i32) {
    %c0_i32 = arith.constant 0 : i32
    %c0_i32_0 = arith.constant 0 : i32
    %c0_i32_1 = arith.constant 0 : i32
    return %c0_i32, %c0_i32_0 : i32, i32
  }
  func.func @transform_3(%arg0: i32) -> (i32, i32) {
    %c0_i32 = arith.constant 0 : i32
    %c0_i32_0 = arith.constant 0 : i32
    %c0_i32_1 = arith.constant 0 : i32
    return %c0_i32, %c0_i32_0 : i32, i32
  }
  func.func @transform_4(%arg0: i32) -> (i32, i32) {
    %c0_i32 = arith.constant 0 : i32
    %c0_i32_0 = arith.constant 0 : i32
    %c0_i32_1 = arith.constant 0 : i32
    return %c0_i32, %c0_i32_0 : i32, i32
  }
  func.func @transform_5(%arg0: i32) -> (i32, i32, i32) {
    %c0_i32 = arith.constant 0 : i32
    %c0_i32_0 = arith.constant 0 : i32
    %c0_i32_1 = arith.constant 0 : i32
    return %arg0, %c0_i32, %c0_i32_0 : i32, i32, i32
  }
}

</mosaic_0001>

<llo_original>
// kernel: tpu_custom_call.1
$region0: #{tpu_custom_call.1}
  #allocation0 [shape = 'u32[]', space=smem, size = 0x4, offset = 0x4, fixed_abs, tag = 'smem constant byte address 0x4 - core index']
  #allocation1 [shape = 'u32[72,128]{1,0:T(1,128)}', space=vmem, size = 0x9000, scoped, tag = 'internal scratch']
  %s0 = inlined_call_operand.hbm [shape: f32[2,8,384], index: 0, kind: input, shape index: {}]
  %s1 = inlined_call_operand.hbm [shape: f32[384,384], index: 1, kind: input, shape index: {}]
  %s2 = inlined_call_operand.hbm [shape: f32[384,384], index: 2, kind: input, shape index: {}]
  %s3 = inlined_call_operand.hbm [shape: f32[384,384], index: 3, kind: input, shape index: {}]
  %s4 = inlined_call_operand.vmem [shape: f32[1,384], index: 4, kind: input, shape index: {}]
  %s5 = inlined_call_operand.hbm [shape: f32[2,8,384], index: 5, kind: output, shape index: {}]
  %s6 = sld [smem:[#allocation0]]
  $region69: #{tpu_custom_call.1} parent=0
    _
  %s8 = ssub.s32 1, %s6
  %s9 = scalar_select 0, %s8, %s6
  $region1: #{tpu_custom_call.1} parent=0
    #allocation2 [shape = 'u8[24576]{0}', space=vmem, size = 0x6000, scoped, tag = 'input window, operand 0']
    #allocation3 [shape = 's32[2]{0}', space=sflag, size = 0x8, scoped, tag = 'scoped memory for tpu_custom_call.1']
    #allocation4 [shape = 's32[2]{0}', space=sflag, size = 0x8, scoped, tag = 'scoped memory for tpu_custom_call.1']
    #allocation5 [shape = 'u8[589824]{0}', space=vmem, size = 0x90000, scoped, tag = 'input window, operand 1, single buffered']
    #allocation6 [shape = 's32[1]{0}', space=sflag, size = 0x4, scoped, tag = 'scoped memory for tpu_custom_call.1']
    #allocation7 [shape = 'u8[589824]{0}', space=vmem, size = 0x90000, scoped, tag = 'input window, operand 2, single buffered']
    #allocation8 [shape = 'u8[589824]{0}', space=vmem, size = 0x90000, scoped, tag = 'input window, operand 3, single buffered']
    #allocation9 [shape = 's32[1]{0}', space=sflag, size = 0x4, scoped, tag = 'scoped memory for tpu_custom_call.1']
    #allocation10 [shape = 'u8[24576]{0}', space=vmem, size = 0x6000, scoped, tag = 'output window, operand 0']
    %10 = vsyncpa [#allocation3], 0
    %s11 = scalar_lea.sflag [#allocation3], 1
    %12 = vsyncpa %s11, 0
    %13 = vsyncpa [#allocation6], 0
    %14 = vsyncpa [#allocation9], 0
    %15 = vsyncpa [#allocation4], 0
    %s16 = scalar_lea.sflag [#allocation4], 1
    %17 = vsyncpa %s16, 0
    loop: start=0, step=1, limit=4
    $region2: #{tpu_custom_call.1} parent=1 // loop_pre_header
      _
    $region3: #{tpu_custom_call.1} parent=1 // loop_header
      %s19 = sphi 0, %s23
      %p20 = scmp.ge.s32.totalorder %s19, 4
      %s29 = sphi 0, %s31
      %s32 = sphi 0, %s29
      %s33 = sphi 0, %s32
      %s49 = sphi 0, %s33
      %s53 = sphi 0, %s53
      %s55 = sphi 0, %s53
      %s56 = sphi 0, %s55
      %s70 = sphi 0, %s56
      %s74 = sphi 0, %s74
      %s76 = sphi 0, %s74
      %s77 = sphi 0, %s76
      %s91 = sphi 0, %s77
      %s95 = sphi 0, %s95
      %s97 = sphi 0, %s95
      %s98 = sphi 0, %s97
      %s112 = sphi 0, %s98
      %s116 = sphi 0, %s116
      %s118 = sphi 0, %s116
      %s119 = sphi 0, %s118
      %s133 = sphi 0, %s119
      %s139 = sphi 0, %s141
      %s142 = sphi 0, %s139
      %s143 = sphi 0, %s142
      %s159 = sphi 0, %s143
    $region4: #{tpu_custom_call.1} parent=1 // loop_header_branch
      %22 = sbr.rel (%p20) target = $region8
    $region5: #{tpu_custom_call.1} parent=1 // loop_body
      %s24 = ssub.s32 %s19, 1
      %s25 = ssub.s32 %s19, 2
      %s26 = sadd.s32 %s19, 1
      %s27 = ssub.s32 %s19, %s26
      %p28 = scmp.eq.s32.totalorder %s27, 0
      %s30 = sadd.s32 %s29, 1
      %s31 = scalar_select %p28, %s29, %s30
      %p34 = pneg %p28
      %p35 = scmp.eq.s32.totalorder %s19, 1
      %p36 = por %p34, %p35
      %p37 = scmp.ne.s32.totalorder %s29, %s32
      %p38 = scmp.eq.s32.totalorder %s19, 0
      %p39 = por %p37, %p38
      %p40 = scmp.ne.s32.totalorder %s29, %s32
      %p41 = scmp.eq.s32.totalorder %s24, 1
      %p42 = por %p40, %p41
      %p43 = scmp.ne.s32.totalorder %s32, %s33
      %p44 = scmp.eq.s32.totalorder %s24, 0
      %p45 = por %p43, %p44
      %p46 = scmp.ne.s32.totalorder %s32, %s33
      %p47 = scmp.eq.s32.totalorder %s25, 1
      %p48 = por %p46, %p47
      %p50 = scmp.ne.s32.totalorder %s33, %s49
      %p51 = scmp.eq.s32.totalorder %s25, 0
      %p52 = por %p50, %p51
      %s54 = sadd.s32 %s53, 1
      %p57 = scmp.eq.s32.totalorder %s19, 1
      %p58 = scmp.ne.s32.totalorder %s53, %s55
      %p59 = scmp.eq.s32.totalorder %s19, 0
      %p60 = por %p58, %p59
      %p61 = scmp.ne.s32.totalorder %s53, %s55
      %p62 = scmp.eq.s32.totalorder %s24, 1
      %p63 = por %p61, %p62
      %p64 = scmp.ne.s32.totalorder %s55, %s56
      %p65 = scmp.eq.s32.totalorder %s24, 0
      %p66 = por %p64, %p65
      %p67 = scmp.ne.s32.totalorder %s55, %s56
      %p68 = scmp.eq.s32.totalorder %s25, 1
      %p69 = por %p67, %p68
      %p71 = scmp.ne.s32.totalorder %s56, %s70
      %p72 = scmp.eq.s32.totalorder %s25, 0
      %p73 = por %p71, %p72
      %s75 = sadd.s32 %s74, 1
      %p78 = scmp.eq.s32.totalorder %s19, 1
      %p79 = scmp.ne.s32.totalorder %s74, %s76
      %p80 = scmp.eq.s32.totalorder %s19, 0
      %p81 = por %p79, %p80
      %p82 = scmp.ne.s32.totalorder %s74, %s76
      %p83 = scmp.eq.s32.totalorder %s24, 1
      %p84 = por %p82, %p83
      %p85 = scmp.ne.s32.totalorder %s76, %s77
      %p86 = scmp.eq.s32.totalorder %s24, 0
      %p87 = por %p85, %p86
      %p88 = scmp.ne.s32.totalorder %s76, %s77
      %p89 = scmp.eq.s32.totalorder %s25, 1
      %p90 = por %p88, %p89
      %p92 = scmp.ne.s32.totalorder %s77, %s91
      %p93 = scmp.eq.s32.totalorder %s25, 0
      %p94 = por %p92, %p93
      %s96 = sadd.s32 %s95, 1
      %p99 = scmp.eq.s32.totalorder %s19, 1
      %p100 = scmp.ne.s32.totalorder %s95, %s97
      %p101 = scmp.eq.s32.totalorder %s19, 0
      %p102 = por %p100, %p101
      %p103 = scmp.ne.s32.totalorder %s95, %s97
      %p104 = scmp.eq.s32.totalorder %s24, 1
      %p105 = por %p103, %p104
      %p106 = scmp.ne.s32.totalorder %s97, %s98
      %p107 = scmp.eq.s32.totalorder %s24, 0
      %p108 = por %p106, %p107
      %p109 = scmp.ne.s32.totalorder %s97, %s98
      %p110 = scmp.eq.s32.totalorder %s25, 1
      %p111 = por %p109, %p110
      %p113 = scmp.ne.s32.totalorder %s98, %s112
      %p114 = scmp.eq.s32.totalorder %s25, 0
      %p115 = por %p113, %p114
      %s117 = sadd.s32 %s116, 1
      %p120 = scmp.eq.s32.totalorder %s19, 1
      %p121 = scmp.ne.s32.totalorder %s116, %s118
      %p122 = scmp.eq.s32.totalorder %s19, 0
      %p123 = por %p121, %p122
      %p124 = scmp.ne.s32.totalorder %s116, %s118
      %p125 = scmp.eq.s32.totalorder %s24, 1
      %p126 = por %p124, %p125
      %p127 = scmp.ne.s32.totalorder %s118, %s119
      %p128 = scmp.eq.s32.totalorder %s24, 0
      %p129 = por %p127, %p128
      %p130 = scmp.ne.s32.totalorder %s118, %s119
      %p131 = scmp.eq.s32.totalorder %s25, 1
      %p132 = por %p130, %p131
      %p134 = scmp.ne.s32.totalorder %s119, %s133
      %p135 = scmp.eq.s32.totalorder %s25, 0
      %p136 = por %p134, %p135
      %s137 = ssub.s32 %s19, %s26
      %p138 = scmp.eq.s32.totalorder %s137, 0
      %s140 = sadd.s32 %s139, 1
      %s141 = scalar_select %p138, %s139, %s140
      %p144 = pneg %p138
      %p145 = scmp.eq.s32.totalorder %s19, 1
      %p146 = por %p144, %p145
      %p147 = scmp.ne.s32.totalorder %s139, %s142
      %p148 = scmp.eq.s32.totalorder %s19, 0
      %p149 = por %p147, %p148
      %p150 = scmp.ne.s32.totalorder %s139, %s142
      %p151 = scmp.eq.s32.totalorder %s24, 1
      %p152 = por %p150, %p151
      %p153 = scmp.ne.s32.totalorder %s142, %s143
      %p154 = scmp.eq.s32.totalorder %s24, 0
      %p155 = por %p153, %p154
      %p156 = scmp.ne.s32.totalorder %s142, %s143
      %p157 = scmp.eq.s32.totalorder %s25, 1
      %p158 = por %p156, %p157
      %p160 = scmp.ne.s32.totalorder %s143, %s159
      %p161 = scmp.eq.s32.totalorder %s25, 0
      %p162 = por %p160, %p161
      %p163 = scmp.le.s32.totalorder 1, %s19
      %p164 = scmp.lt.s32.totalorder %s19, 3
      %p165 = pnand %p163, %p164
      %p166 = pneg %p165
      // Predicated region
      $region9: #{tpu_custom_call.1} parent=5 // pred_check
        _
      $region10: #{tpu_custom_call.1} parent=5 // pred_check_branch
        %168 = sbr.rel (%p165) target = $region12
      $region11: #{tpu_custom_call.1} parent=5 // pred_region
        %s169 = ssub.s32 %s19, 1
        // Predicated region
        $region13: #{tpu_custom_call.1} parent=11 // pred_check
          %p170 = pneg %p66
        $region14: #{tpu_custom_call.1} parent=11 // pred_check_branch
          %172 = sbr.rel (%p170) target = $region16
        $region15: #{tpu_custom_call.1} parent=11 // pred_region
          %174 = vsyncadd [#allocation6], 0
          %s175 = sshll.u32 %s1, 4
          %s176 = int_to_ptr.hbm [resolvable:$true] %s175
          %s177 = sshll.u32 [#allocation5], 4
          %s178 = int_to_ptr.vmem [resolvable:$true] %s177
          %183 = dma.hbm_to_vmem [thread:$0]  %s176, 18432, %s178, [#allocation6], 384, 384, 24
        $region16: #{tpu_custom_call.1} parent=11 // pred_fallthru
          _
        // Predicated region
        $region17: #{tpu_custom_call.1} parent=11 // pred_check
          %p184 = pneg %p87
        $region18: #{tpu_custom_call.1} parent=11 // pred_check_branch
          %186 = sbr.rel (%p184) target = $region20
        $region19: #{tpu_custom_call.1} parent=11 // pred_region
          %188 = vsyncadd [#allocation6], 0
          %s189 = sshll.u32 %s2, 4
          %s190 = int_to_ptr.hbm [resolvable:$true] %s189
          %s191 = sshll.u32 [#allocation7], 4
          %s192 = int_to_ptr.vmem [resolvable:$true] %s191
          %197 = dma.hbm_to_vmem [thread:$0]  %s190, 18432, %s192, [#allocation6], 384, 384, 24
        $region20: #{tpu_custom_call.1} parent=11 // pred_fallthru
          _
        // Predicated region
        $region21: #{tpu_custom_call.1} parent=11 // pred_check
          %p198 = pneg %p108
        $region22: #{tpu_custom_call.1} parent=11 // pred_check_branch
          %200 = sbr.rel (%p198) target = $region24
        $region23: #{tpu_custom_call.1} parent=11 // pred_region
          %202 = vsyncadd [#allocation9], 0
          %s203 = sshll.u32 %s3, 4
          %s204 = int_to_ptr.hbm [resolvable:$true] %s203
          %s205 = sshll.u32 [#allocation8], 4
          %s206 = int_to_ptr.vmem [resolvable:$true] %s205
          %211 = dma.hbm_to_vmem [thread:$0]  %s204, 18432, %s206, [#allocation9], 384, 384, 24
        $region24: #{tpu_custom_call.1} parent=11 // pred_fallthru
          _
        // Predicated region
        $region25: #{tpu_custom_call.1} parent=11 // pred_check
          %p212 = pneg %p129
        $region26: #{tpu_custom_call.1} parent=11 // pred_check_branch
          %214 = sbr.rel (%p212) target = $region28
        $region27: #{tpu_custom_call.1} parent=11 // pred_region
          _
        $region28: #{tpu_custom_call.1} parent=11 // pred_fallthru
          _
      $region12: #{tpu_custom_call.1} parent=5 // pred_fallthru
        _
      %p215 = scmp.lt.s32.totalorder %s19, 2
      // Predicated region
      $region29: #{tpu_custom_call.1} parent=5 // pred_check
        %p216 = pneg %p215
      $region30: #{tpu_custom_call.1} parent=5 // pred_check_branch
        %218 = sbr.rel (%p216) target = $region32
      $region31: #{tpu_custom_call.1} parent=5 // pred_region
        // Predicated region
        $region33: #{tpu_custom_call.1} parent=31 // pred_check
          %p219 = pneg %p39
        $region34: #{tpu_custom_call.1} parent=31 // pred_check_branch
          %221 = sbr.rel (%p219) target = $region36
        $region35: #{tpu_custom_call.1} parent=31 // pred_region
          %s222 = sand.u32 %s29, 1
          %s223 = scalar_lea.sflag [#allocation3], %s222
          %s224 = sand.u32 %s29, 1
          %s225 = smul.addr %s224, 24
          %s226 = scalar_lea.vmem [#allocation2], %s225
          %228 = vsyncadd %s223, 0
          %s229 = smul.addr %s19, 3
          %s230 = smul.addr %s229, 8
          %s231 = scalar_lea.hbm %s0, %s230
          %s233 = sshll.u32 %s231, 4
          %s234 = int_to_ptr.hbm [resolvable:$true] %s233
          %s235 = sshll.u32 %s226, 4
          %s236 = int_to_ptr.vmem [resolvable:$true] %s235
          %238 = dma.hbm_to_vmem [thread:$0]  %s234, 384, %s236, %s223
        $region36: #{tpu_custom_call.1} parent=31 // pred_fallthru
          _
      $region32: #{tpu_custom_call.1} parent=5 // pred_fallthru
        _
      %p239 = scmp.le.s32.totalorder 1, %s19
      %p240 = scmp.lt.s32.totalorder %s19, 3
      %p241 = pnand %p239, %p240
      %p242 = pneg %p241
      // Predicated region
      $region37: #{tpu_custom_call.1} parent=5 // pred_check
        _
      $region38: #{tpu_custom_call.1} parent=5 // pred_check_branch
        %244 = sbr.rel (%p241) target = $region40
      $region39: #{tpu_custom_call.1} parent=5 // pred_region
        %s245 = ssub.s32 %s19, 1
        %s246 = sand.u32 %s32, 1
        %s247 = scalar_lea.sflag [#allocation3], %s246
        %s248 = sand.u32 %s32, 1
        %s249 = smul.addr %s248, 24
        %s250 = scalar_lea.vmem [#allocation2], %s249
        // Predicated region
        $region41: #{tpu_custom_call.1} parent=39 // pred_check
          %p251 = pneg %p45
        $region42: #{tpu_custom_call.1} parent=39 // pred_check_branch
          %253 = sbr.rel (%p251) target = $region44
        $region43: #{tpu_custom_call.1} parent=39 // pred_region
          %255 = dma.done %s247, 384
        $region44: #{tpu_custom_call.1} parent=39 // pred_fallthru
          _
        // Predicated region
        $region45: #{tpu_custom_call.1} parent=39 // pred_check
          %p256 = pneg %p66
        $region46: #{tpu_custom_call.1} parent=39 // pred_check_branch
          %258 = sbr.rel (%p256) target = $region48
        $region47: #{tpu_custom_call.1} parent=39 // pred_region
          %260 = dma.done [#allocation6], 18432
        $region48: #{tpu_custom_call.1} parent=39 // pred_fallthru
          _
        // Predicated region
        $region49: #{tpu_custom_call.1} parent=39 // pred_check
          %p261 = pneg %p87
        $region50: #{tpu_custom_call.1} parent=39 // pred_check_branch
          %263 = sbr.rel (%p261) target = $region52
        $region51: #{tpu_custom_call.1} parent=39 // pred_region
          %265 = dma.done [#allocation6], 18432
        $region52: #{tpu_custom_call.1} parent=39 // pred_fallthru
          _
        // Predicated region
        $region53: #{tpu_custom_call.1} parent=39 // pred_check
          %p266 = pneg %p108
        $region54: #{tpu_custom_call.1} parent=39 // pred_check_branch
          %268 = sbr.rel (%p266) target = $region56
        $region55: #{tpu_custom_call.1} parent=39 // pred_region
          %270 = dma.done [#allocation9], 18432
        $region56: #{tpu_custom_call.1} parent=39 // pred_fallthru
          _
        %s271 = sand.u32 %s32, 1
        %s272 = scalar_lea.sflag [#allocation3], %s271
        %s273 = sand.u32 %s32, 1
        %s274 = smul.addr %s273, 24
        %s275 = scalar_lea.vmem [#allocation2], %s274
        %p276 = pneg %p45
        %p277 = pneg %p42
        %p278 = pneg %p66
        %p279 = pneg %p63
        %p280 = pneg %p87
        %p281 = pneg %p84
        %p282 = pneg %p108
        %p283 = pneg %p105
        %p284 = pneg %p129
        %p285 = pneg %p126
        %p286 = pneg %p155
        %p287 = pneg %p152
        %s288 = sand.u32 %s142, 1
        %s289 = scalar_lea.sflag [#allocation4], %s288
        %s290 = sand.u32 %s142, 1
        %s291 = smul.addr %s290, 24
        %s292 = scalar_lea.vmem [#allocation10], %s291
        %v293 = vld [vmem:[%s250] sm:$0xff]
        %v294 = vld [vmem:[%s250 + $0x8] sm:$0xff]
        %v295 = vld [vmem:[%s250 + $0x10] sm:$0xff]
        %v296 = vld [vmem:[#allocation5] sm:$0xff]
        %v297 = vld [vmem:[#allocation5 + $0x8] sm:$0xff]
        %v298 = vld [vmem:[#allocation5 + $0x10] sm:$0xff]
        %v299 = vld [vmem:[#allocation5 + $0x18] sm:$0xff]
        %v300 = vld [vmem:[#allocation5 + $0x20] sm:$0xff]
        %v301 = vld [vmem:[#allocation5 + $0x28] sm:$0xff]
        %v302 = vld [vmem:[#allocation5 + $0x30] sm:$0xff]
        %v303 = vld [vmem:[#allocation5 + $0x38] sm:$0xff]
        %v304 = vld [vmem:[#allocation5 + $0x40] sm:$0xff]
        %v305 = vld [vmem:[#allocation5 + $0x48] sm:$0xff]
        %v306 = vld [vmem:[#allocation5 + $0x50] sm:$0xff]
        %v307 = vld [vmem:[#allocation5 + $0x58] sm:$0xff]
        %v308 = vld [vmem:[#allocation5 + $0x60] sm:$0xff]
        %v309 = vld [vmem:[#allocation5 + $0x68] sm:$0xff]
        %v310 = vld [vmem:[#allocation5 + $0x70] sm:$0xff]
        %v311 = vld [vmem:[#allocation5 + $0x78] sm:$0xff]
        %v312 = vld [vmem:[#allocation5 + $0x80] sm:$0xff]
        %v313 = vld [vmem:[#allocation5 + $0x88] sm:$0xff]
        %v314 = vld [vmem:[#allocation5 + $0x90] sm:$0xff]
        %v315 = vld [vmem:[#allocation5 + $0x98] sm:$0xff]
        %v316 = vld [vmem:[#allocation5 + $0xa0] sm:$0xff]
        %v317 = vld [vmem:[#allocation5 + $0xa8] sm:$0xff]
        %v318 = vld [vmem:[#allocation5 + $0xb0] sm:$0xff]
        %v319 = vld [vmem:[#allocation5 + $0xb8] sm:$0xff]
        %v320 = vld [vmem:[#allocation5 + $0xc0] sm:$0xff]
        %v321 = vld [vmem:[#allocation5 + $0xc8] sm:$0xff]
        %v322 = vld [vmem:[#allocation5 + $0xd0] sm:$0xff]
        %v323 = vld [vmem:[#allocation5 + $0xd8] sm:$0xff]
        %v324 = vld [vmem:[#allocation5 + $0xe0] sm:$0xff]
        %v325 = vld [vmem:[#allocation5 + $0xe8] sm:$0xff]
        %v326 = vld [vmem:[#allocation5 + $0xf0] sm:$0xff]
        %v327 = vld [vmem:[#allocation5 + $0xf8] sm:$0xff]
        %v328 = vld [vmem:[#allocation5 + $0x100] sm:$0xff]
        %v329 = vld [vmem:[#allocation5 + $0x108] sm:$0xff]
        %v330 = vld [vmem:[#allocation5 + $0x110] sm:$0xff]
        %v331 = vld [vmem:[#allocation5 + $0x118] sm:$0xff]
        %v332 = vld [vmem:[#allocation5 + $0x120] sm:$0xff]
        %v333 = vld [vmem:[#allocation5 + $0x128] sm:$0xff]
        %v334 = vld [vmem:[#allocation5 + $0x130] sm:$0xff]
        %v335 = vld [vmem:[#allocation5 + $0x138] sm:$0xff]
        %v336 = vld [vmem:[#allocation5 + $0x140] sm:$0xff]
        %v337 = vld [vmem:[#allocation5 + $0x148] sm:$0xff]
        %v338 = vld [vmem:[#allocation5 + $0x150] sm:$0xff]
        %v339 = vld [vmem:[#allocation5 + $0x158] sm:$0xff]
        %v340 = vld [vmem:[#allocation5 + $0x160] sm:$0xff]
        %v341 = vld [vmem:[#allocation5 + $0x168] sm:$0xff]
        %v342 = vld [vmem:[#allocation5 + $0x170] sm:$0xff]
        %v343 = vld [vmem:[#allocation5 + $0x178] sm:$0xff]
        %v344 = vld [vmem:[#allocation5 + $0x180] sm:$0xff]
        %v345 = vld [vmem:[#allocation5 + $0x188] sm:$0xff]
        %v346 = vld [vmem:[#allocation5 + $0x190] sm:$0xff]
        %v347 = vld [vmem:[#allocation5 + $0x198] sm:$0xff]
        %v348 = vld [vmem:[#allocation5 + $0x1a0] sm:$0xff]
        %v349 = vld [vmem:[#allocation5 + $0x1a8] sm:$0xff]
        %v350 = vld [vmem:[#allocation5 + $0x1b0] sm:$0xff]
        %v351 = vld [vmem:[#allocation5 + $0x1b8] sm:$0xff]
        %v352 = vld [vmem:[#allocation5 + $0x1c0] sm:$0xff]
        %v353 = vld [vmem:[#allocation5 + $0x1c8] sm:$0xff]
        %v354 = vld [vmem:[#allocation5 + $0x1d0] sm:$0xff]
        %v355 = vld [vmem:[#allocation5 + $0x1d8] sm:$0xff]
        %v356 = vld [vmem:[#allocation5 + $0x1e0] sm:$0xff]
        %v357 = vld [vmem:[#allocation5 + $0x1e8] sm:$0xff]
        %v358 = vld [vmem:[#allocation5 + $0x1f0] sm:$0xff]
        %v359 = vld [vmem:[#allocation5 + $0x1f8] sm:$0xff]
        %v360 = vld [vmem:[#allocation5 + $0x200] sm:$0xff]
        %v361 = vld [vmem:[#allocation5 + $0x208] sm:$0xff]
        %v362 = vld [vmem:[#allocation5 + $0x210] sm:$0xff]
        %v363 = vld [vmem:[#allocation5 + $0x218] sm:$0xff]
        %v364 = vld [vmem:[#allocation5 + $0x220] sm:$0xff]
        %v365 = vld [vmem:[#allocation5 + $0x228] sm:$0xff]
        %v366 = vld [vmem:[#allocation5 + $0x230] sm:$0xff]
        %v367 = vld [vmem:[#allocation5 + $0x238] sm:$0xff]
        %v368 = vld [vmem:[#allocation5 + $0x240] sm:$0xff]
        %v369 = vld [vmem:[#allocation5 + $0x248] sm:$0xff]
        %v370 = vld [vmem:[#allocation5 + $0x250] sm:$0xff]
        %v371 = vld [vmem:[#allocation5 + $0x258] sm:$0xff]
        %v372 = vld [vmem:[#allocation5 + $0x260] sm:$0xff]
        %v373 = vld [vmem:[#allocation5 + $0x268] sm:$0xff]
        %v374 = vld [vmem:[#allocation5 + $0x270] sm:$0xff]
        %v375 = vld [vmem:[#allocation5 + $0x278] sm:$0xff]
        %v376 = vld [vmem:[#allocation5 + $0x280] sm:$0xff]
        %v377 = vld [vmem:[#allocation5 + $0x288] sm:$0xff]
        %v378 = vld [vmem:[#allocation5 + $0x290] sm:$0xff]
        %v379 = vld [vmem:[#allocation5 + $0x298] sm:$0xff]
        %v380 = vld [vmem:[#allocation5 + $0x2a0] sm:$0xff]
        %v381 = vld [vmem:[#allocation5 + $0x2a8] sm:$0xff]
        %v382 = vld [vmem:[#allocation5 + $0x2b0] sm:$0xff]
        %v383 = vld [vmem:[#allocation5 + $0x2b8] sm:$0xff]
        %v384 = vld [vmem:[#allocation5 + $0x2c0] sm:$0xff]
        %v385 = vld [vmem:[#allocation5 + $0x2c8] sm:$0xff]
        %v386 = vld [vmem:[#allocation5 + $0x2d0] sm:$0xff]
        %v387 = vld [vmem:[#allocation5 + $0x2d8] sm:$0xff]
        %v388 = vld [vmem:[#allocation5 + $0x2e0] sm:$0xff]
        %v389 = vld [vmem:[#allocation5 + $0x2e8] sm:$0xff]
        %v390 = vld [vmem:[#allocation5 + $0x2f0] sm:$0xff]
        %v391 = vld [vmem:[#allocation5 + $0x2f8] sm:$0xff]
        %v392 = vld [vmem:[#allocation5 + $0x300] sm:$0xff]
        %v393 = vld [vmem:[#allocation5 + $0x308] sm:$0xff]
        %v394 = vld [vmem:[#allocation5 + $0x310] sm:$0xff]
        %v395 = vld [vmem:[#allocation5 + $0x318] sm:$0xff]
        %v396 = vld [vmem:[#allocation5 + $0x320] sm:$0xff]
        %v397 = vld [vmem:[#allocation5 + $0x328] sm:$0xff]
        %v398 = vld [vmem:[#allocation5 + $0x330] sm:$0xff]
        %v399 = vld [vmem:[#allocation5 + $0x338] sm:$0xff]
        %v400 = vld [vmem:[#allocation5 + $0x340] sm:$0xff]
        %v401 = vld [vmem:[#allocation5 + $0x348] sm:$0xff]
        %v402 = vld [vmem:[#allocation5 + $0x350] sm:$0xff]
        %v403 = vld [vmem:[#allocation5 + $0x358] sm:$0xff]
        %v404 = vld [vmem:[#allocation5 + $0x360] sm:$0xff]
        %v405 = vld [vmem:[#allocation5 + $0x368] sm:$0xff]
        %v406 = vld [vmem:[#allocation5 + $0x370] sm:$0xff]
        %v407 = vld [vmem:[#allocation5 + $0x378] sm:$0xff]
        %v408 = vld [vmem:[#allocation5 + $0x380] sm:$0xff]
        %v409 = vld [vmem:[#allocation5 + $0x388] sm:$0xff]
        %v410 = vld [vmem:[#allocation5 + $0x390] sm:$0xff]
        %v411 = vld [vmem:[#allocation5 + $0x398] sm:$0xff]
        %v412 = vld [vmem:[#allocation5 + $0x3a0] sm:$0xff]
        %v413 = vld [vmem:[#allocation5 + $0x3a8] sm:$0xff]
        %v414 = vld [vmem:[#allocation5 + $0x3b0] sm:$0xff]
        %v415 = vld [vmem:[#allocation5 + $0x3b8] sm:$0xff]
        %v416 = vld [vmem:[#allocation5 + $0x3c0] sm:$0xff]
        %v417 = vld [vmem:[#allocation5 + $0x3c8] sm:$0xff]
        %v418 = vld [vmem:[#allocation5 + $0x3d0] sm:$0xff]
        %v419 = vld [vmem:[#allocation5 + $0x3d8] sm:$0xff]
        %v420 = vld [vmem:[#allocation5 + $0x3e0] sm:$0xff]
        %v421 = vld [vmem:[#allocation5 + $0x3e8] sm:$0xff]
        %v422 = vld [vmem:[#allocation5 + $0x3f0] sm:$0xff]
        %v423 = vld [vmem:[#allocation5 + $0x3f8] sm:$0xff]
        %v424 = vld [vmem:[#allocation5 + $0x400] sm:$0xff]
        %v425 = vld [vmem:[#allocation5 + $0x408] sm:$0xff]
        %v426 = vld [vmem:[#allocation5 + $0x410] sm:$0xff]
        %v427 = vld [vmem:[#allocation5 + $0x418] sm:$0xff]
        %v428 = vld [vmem:[#allocation5 + $0x420] sm:$0xff]
        %v429 = vld [vmem:[#allocation5 + $0x428] sm:$0xff]
        %v430 = vld [vmem:[#allocation5 + $0x430] sm:$0xff]
        %v431 = vld [vmem:[#allocation5 + $0x438] sm:$0xff]
        %v432 = vld [vmem:[#allocation5 + $0x440] sm:$0xff]
        %v433 = vld [vmem:[#allocation5 + $0x448] sm:$0xff]
        %v434 = vld [vmem:[#allocation5 + $0x450] sm:$0xff]
        %v435 = vld [vmem:[#allocation5 + $0x458] sm:$0xff]
        %v436 = vld [vmem:[#allocation5 + $0x460] sm:$0xff]
        %v437 = vld [vmem:[#allocation5 + $0x468] sm:$0xff]
        %v438 = vld [vmem:[#allocation5 + $0x470] sm:$0xff]
        %v439 = vld [vmem:[#allocation5 + $0x478] sm:$0xff]
        %440 = vmatpush.msra.mxu0 %v341
        %441 = vmatpush.msra.mxu0 %v338
        %442 = vmatpush.msra.mxu0 %v335
        %443 = vmatpush.msra.mxu0 %v332
        %444 = vmatpush.msra.mxu0 %v329
        %445 = vmatpush.msra.mxu0 %v326
        %446 = vmatpush.msra.mxu0 %v323
        %447 = vmatpush.msra.mxu0 %v320
        %448 = vmatpush.msra.mxu0 %v317
        %449 = vmatpush.msra.mxu0 %v314
        %450 = vmatpush.msra.mxu0 %v311
        %451 = vmatpush.msra.mxu0 %v308
        %452 = vmatpush.msra.mxu0 %v305
        %453 = vmatpush.msra.mxu0 %v302
        %454 = vmatpush.msra.mxu0 %v299
        %455 = vmatpush.msra.mxu0 %v296
        %456 = vmatmul.f32.gmra.mxu0 %v293
        %v457 = vpop.f32.mrf.mxu0
        %v458 = vadd.f32 0.0, %v457
        %459 = vdwg.mxu0
        %460 = vmatpush.msra.mxu0 %v389
        %461 = vmatpush.msra.mxu0 %v386
        %462 = vmatpush.msra.mxu0 %v383
        %463 = vmatpush.msra.mxu0 %v380
        %464 = vmatpush.msra.mxu0 %v377
        %465 = vmatpush.msra.mxu0 %v374
        %466 = vmatpush.msra.mxu0 %v371
        %467 = vmatpush.msra.mxu0 %v368
        %468 = vmatpush.msra.mxu0 %v365
        %469 = vmatpush.msra.mxu0 %v362
        %470 = vmatpush.msra.mxu0 %v359
        %471 = vmatpush.msra.mxu0 %v356
        %472 = vmatpush.msra.mxu0 %v353
        %473 = vmatpush.msra.mxu0 %v350
        %474 = vmatpush.msra.mxu0 %v347
        %475 = vmatpush.msra.mxu0 %v344
        %476 = vmatmul.f32.gmra.mxu0 %v294
        %v477 = vpop.f32.mrf.mxu0
        %v478 = vadd.f32 %v458, %v477
        %479 = vdwg.mxu0
        %480 = vmatpush.msra.mxu0 %v437
        %481 = vmatpush.msra.mxu0 %v434
        %482 = vmatpush.msra.mxu0 %v431
        %483 = vmatpush.msra.mxu0 %v428
        %484 = vmatpush.msra.mxu0 %v425
        %485 = vmatpush.msra.mxu0 %v422
        %486 = vmatpush.msra.mxu0 %v419
        %487 = vmatpush.msra.mxu0 %v416
        %488 = vmatpush.msra.mxu0 %v413
        %489 = vmatpush.msra.mxu0 %v410
        %490 = vmatpush.msra.mxu0 %v407
        %491 = vmatpush.msra.mxu0 %v404
        %492 = vmatpush.msra.mxu0 %v401
        %493 = vmatpush.msra.mxu0 %v398
        %494 = vmatpush.msra.mxu0 %v395
        %495 = vmatpush.msra.mxu0 %v392
        %496 = vmatmul.f32.gmra.mxu0 %v295
        %v497 = vpop.f32.mrf.mxu0
        %v498 = vadd.f32 %v478, %v497
        %499 = vdwg.mxu0
        %500 = vmatpush.msra.mxu0 %v342
        %501 = vmatpush.msra.mxu0 %v339
        %502 = vmatpush.msra.mxu0 %v336
        %503 = vmatpush.msra.mxu0 %v333
        %504 = vmatpush.msra.mxu0 %v330
        %505 = vmatpush.msra.mxu0 %v327
        %506 = vmatpush.msra.mxu0 %v324
        %507 = vmatpush.msra.mxu0 %v321
        %508 = vmatpush.msra.mxu0 %v318
        %509 = vmatpush.msra.mxu0 %v315
        %510 = vmatpush.msra.mxu0 %v312
        %511 = vmatpush.msra.mxu0 %v309
        %512 = vmatpush.msra.mxu0 %v306
        %513 = vmatpush.msra.mxu0 %v303
        %514 = vmatpush.msra.mxu0 %v300
        %515 = vmatpush.msra.mxu0 %v297
        %516 = vmatmul.f32.gmra.mxu0 %v293
        %v517 = vpop.f32.mrf.mxu0
        %v518 = vadd.f32 0.0, %v517
        %519 = vdwg.mxu0
        %520 = vmatpush.msra.mxu0 %v390
        %521 = vmatpush.msra.mxu0 %v387
        %522 = vmatpush.msra.mxu0 %v384
        %523 = vmatpush.msra.mxu0 %v381
        %524 = vmatpush.msra.mxu0 %v378
        %525 = vmatpush.msra.mxu0 %v375
        %526 = vmatpush.msra.mxu0 %v372
        %527 = vmatpush.msra.mxu0 %v369
        %528 = vmatpush.msra.mxu0 %v366
        %529 = vmatpush.msra.mxu0 %v363
        %530 = vmatpush.msra.mxu0 %v360
        %531 = vmatpush.msra.mxu0 %v357
        %532 = vmatpush.msra.mxu0 %v354
        %533 = vmatpush.msra.mxu0 %v351
        %534 = vmatpush.msra.mxu0 %v348
        %535 = vmatpush.msra.mxu0 %v345
        %536 = vmatmul.f32.gmra.mxu0 %v294
        %v537 = vpop.f32.mrf.mxu0
        %v538 = vadd.f32 %v518, %v537
        %539 = vdwg.mxu0
        %540 = vmatpush.msra.mxu0 %v438
        %541 = vmatpush.msra.mxu0 %v435
        %542 = vmatpush.msra.mxu0 %v432
        %543 = vmatpush.msra.mxu0 %v429
        %544 = vmatpush.msra.mxu0 %v426
        %545 = vmatpush.msra.mxu0 %v423
        %546 = vmatpush.msra.mxu0 %v420
        %547 = vmatpush.msra.mxu0 %v417
        %548 = vmatpush.msra.mxu0 %v414
        %549 = vmatpush.msra.mxu0 %v411
        %550 = vmatpush.msra.mxu0 %v408
        %551 = vmatpush.msra.mxu0 %v405
        %552 = vmatpush.msra.mxu0 %v402
        %553 = vmatpush.msra.mxu0 %v399
        %554 = vmatpush.msra.mxu0 %v396
        %555 = vmatpush.msra.mxu0 %v393
        %556 = vmatmul.f32.gmra.mxu0 %v295
        %v557 = vpop.f32.mrf.mxu0
        %v558 = vadd.f32 %v538, %v557
        %559 = vdwg.mxu0
        %560 = vmatpush.msra.mxu0 %v343
        %561 = vmatpush.msra.mxu0 %v340
        %562 = vmatpush.msra.mxu0 %v337
        %563 = vmatpush.msra.mxu0 %v334
        %564 = vmatpush.msra.mxu0 %v331
        %565 = vmatpush.msra.mxu0 %v328
        %566 = vmatpush.msra.mxu0 %v325
        %567 = vmatpush.msra.mxu0 %v322
        %568 = vmatpush.msra.mxu0 %v319
        %569 = vmatpush.msra.mxu0 %v316
        %570 = vmatpush.msra.mxu0 %v313
        %571 = vmatpush.msra.mxu0 %v310
        %572 = vmatpush.msra.mxu0 %v307
        %573 = vmatpush.msra.mxu0 %v304
        %574 = vmatpush.msra.mxu0 %v301
        %575 = vmatpush.msra.mxu0 %v298
        %576 = vmatmul.f32.gmra.mxu0 %v293
        %v577 = vpop.f32.mrf.mxu0
        %v578 = vadd.f32 0.0, %v577
        %579 = vdwg.mxu0
        %580 = vmatpush.msra.mxu0 %v391
        %581 = vmatpush.msra.mxu0 %v388
        %582 = vmatpush.msra.mxu0 %v385
        %583 = vmatpush.msra.mxu0 %v382
        %584 = vmatpush.msra.mxu0 %v379
        %585 = vmatpush.msra.mxu0 %v376
        %586 = vmatpush.msra.mxu0 %v373
        %587 = vmatpush.msra.mxu0 %v370
        %588 = vmatpush.msra.mxu0 %v367
        %589 = vmatpush.msra.mxu0 %v364
        %590 = vmatpush.msra.mxu0 %v361
        %591 = vmatpush.msra.mxu0 %v358
        %592 = vmatpush.msra.mxu0 %v355
        %593 = vmatpush.msra.mxu0 %v352
        %594 = vmatpush.msra.mxu0 %v349
        %595 = vmatpush.msra.mxu0 %v346
        %596 = vmatmul.f32.gmra.mxu0 %v294
        %v597 = vpop.f32.mrf.mxu0
        %v598 = vadd.f32 %v578, %v597
        %599 = vdwg.mxu0
        %600 = vmatpush.msra.mxu0 %v439
        %601 = vmatpush.msra.mxu0 %v436
        %602 = vmatpush.msra.mxu0 %v433
        %603 = vmatpush.msra.mxu0 %v430
        %604 = vmatpush.msra.mxu0 %v427
        %605 = vmatpush.msra.mxu0 %v424
        %606 = vmatpush.msra.mxu0 %v421
        %607 = vmatpush.msra.mxu0 %v418
        %608 = vmatpush.msra.mxu0 %v415
        %609 = vmatpush.msra.mxu0 %v412
        %610 = vmatpush.msra.mxu0 %v409
        %611 = vmatpush.msra.mxu0 %v406
        %612 = vmatpush.msra.mxu0 %v403
        %613 = vmatpush.msra.mxu0 %v400
        %614 = vmatpush.msra.mxu0 %v397
        %615 = vmatpush.msra.mxu0 %v394
        %616 = vmatmul.f32.gmra.mxu0 %v295
        %v617 = vpop.f32.mrf.mxu0
        %v618 = vadd.f32 %v598, %v617
        %619 = vdwg.mxu0
        %v620 = vld [vmem:[#allocation7] sm:$0xff]
        %v621 = vld [vmem:[#allocation7 + $0x8] sm:$0xff]
        %v622 = vld [vmem:[#allocation7 + $0x10] sm:$0xff]
        %v623 = vld [vmem:[#allocation7 + $0x18] sm:$0xff]
        %v624 = vld [vmem:[#allocation7 + $0x20] sm:$0xff]
        %v625 = vld [vmem:[#allocation7 + $0x28] sm:$0xff]
        %v626 = vld [vmem:[#allocation7 + $0x30] sm:$0xff]
        %v627 = vld [vmem:[#allocation7 + $0x38] sm:$0xff]
        %v628 = vld [vmem:[#allocation7 + $0x40] sm:$0xff]
        %v629 = vld [vmem:[#allocation7 + $0x48] sm:$0xff]
        %v630 = vld [vmem:[#allocation7 + $0x50] sm:$0xff]
        %v631 = vld [vmem:[#allocation7 + $0x58] sm:$0xff]
        %v632 = vld [vmem:[#allocation7 + $0x60] sm:$0xff]
        %v633 = vld [vmem:[#allocation7 + $0x68] sm:$0xff]
        %v634 = vld [vmem:[#allocation7 + $0x70] sm:$0xff]
        %v635 = vld [vmem:[#allocation7 + $0x78] sm:$0xff]
        %v636 = vld [vmem:[#allocation7 + $0x80] sm:$0xff]
        %v637 = vld [vmem:[#allocation7 + $0x88] sm:$0xff]
        %v638 = vld [vmem:[#allocation7 + $0x90] sm:$0xff]
        %v639 = vld [vmem:[#allocation7 + $0x98] sm:$0xff]
        %v640 = vld [vmem:[#allocation7 + $0xa0] sm:$0xff]
        %v641 = vld [vmem:[#allocation7 + $0xa8] sm:$0xff]
        %v642 = vld [vmem:[#allocation7 + $0xb0] sm:$0xff]
        %v643 = vld [vmem:[#allocation7 + $0xb8] sm:$0xff]
        %v644 = vld [vmem:[#allocation7 + $0xc0] sm:$0xff]
        %v645 = vld [vmem:[#allocation7 + $0xc8] sm:$0xff]
        %v646 = vld [vmem:[#allocation7 + $0xd0] sm:$0xff]
        %v647 = vld [vmem:[#allocation7 + $0xd8] sm:$0xff]
        %v648 = vld [vmem:[#allocation7 + $0xe0] sm:$0xff]
        %v649 = vld [vmem:[#allocation7 + $0xe8] sm:$0xff]
        %v650 = vld [vmem:[#allocation7 + $0xf0] sm:$0xff]
        %v651 = vld [vmem:[#allocation7 + $0xf8] sm:$0xff]
        %v652 = vld [vmem:[#allocation7 + $0x100] sm:$0xff]
        %v653 = vld [vmem:[#allocation7 + $0x108] sm:$0xff]
        %v654 = vld [vmem:[#allocation7 + $0x110] sm:$0xff]
        %v655 = vld [vmem:[#allocation7 + $0x118] sm:$0xff]
        %v656 = vld [vmem:[#allocation7 + $0x120] sm:$0xff]
        %v657 = vld [vmem:[#allocation7 + $0x128] sm:$0xff]
        %v658 = vld [vmem:[#allocation7 + $0x130] sm:$0xff]
        %v659 = vld [vmem:[#allocation7 + $0x138] sm:$0xff]
        %v660 = vld [vmem:[#allocation7 + $0x140] sm:$0xff]
        %v661 = vld [vmem:[#allocation7 + $0x148] sm:$0xff]
        %v662 = vld [vmem:[#allocation7 + $0x150] sm:$0xff]
        %v663 = vld [vmem:[#allocation7 + $0x158] sm:$0xff]
        %v664 = vld [vmem:[#allocation7 + $0x160] sm:$0xff]
        %v665 = vld [vmem:[#allocation7 + $0x168] sm:$0xff]
        %v666 = vld [vmem:[#allocation7 + $0x170] sm:$0xff]
        %v667 = vld [vmem:[#allocation7 + $0x178] sm:$0xff]
        %v668 = vld [vmem:[#allocation7 + $0x180] sm:$0xff]
        %v669 = vld [vmem:[#allocation7 + $0x188] sm:$0xff]
        %v670 = vld [vmem:[#allocation7 + $0x190] sm:$0xff]
        %v671 = vld [vmem:[#allocation7 + $0x198] sm:$0xff]
        %v672 = vld [vmem:[#allocation7 + $0x1a0] sm:$0xff]
        %v673 = vld [vmem:[#allocation7 + $0x1a8] sm:$0xff]
        %v674 = vld [vmem:[#allocation7 + $0x1b0] sm:$0xff]
        %v675 = vld [vmem:[#allocation7 + $0x1b8] sm:$0xff]
        %v676 = vld [vmem:[#allocation7 + $0x1c0] sm:$0xff]
        %v677 = vld [vmem:[#allocation7 + $0x1c8] sm:$0xff]
        %v678 = vld [vmem:[#allocation7 + $0x1d0] sm:$0xff]
        %v679 = vld [vmem:[#allocation7 + $0x1d8] sm:$0xff]
        %v680 = vld [vmem:[#allocation7 + $0x1e0] sm:$0xff]
        %v681 = vld [vmem:[#allocation7 + $0x1e8] sm:$0xff]
        %v682 = vld [vmem:[#allocation7 + $0x1f0] sm:$0xff]
        %v683 = vld [vmem:[#allocation7 + $0x1f8] sm:$0xff]
        %v684 = vld [vmem:[#allocation7 + $0x200] sm:$0xff]
        %v685 = vld [vmem:[#allocation7 + $0x208] sm:$0xff]
        %v686 = vld [vmem:[#allocation7 + $0x210] sm:$0xff]
        %v687 = vld [vmem:[#allocation7 + $0x218] sm:$0xff]
        %v688 = vld [vmem:[#allocation7 + $0x220] sm:$0xff]
        %v689 = vld [vmem:[#allocation7 + $0x228] sm:$0xff]
        %v690 = vld [vmem:[#allocation7 + $0x230] sm:$0xff]
        %v691 = vld [vmem:[#allocation7 + $0x238] sm:$0xff]
        %v692 = vld [vmem:[#allocation7 + $0x240] sm:$0xff]
        %v693 = vld [vmem:[#allocation7 + $0x248] sm:$0xff]
        %v694 = vld [vmem:[#allocation7 + $0x250] sm:$0xff]
        %v695 = vld [vmem:[#allocation7 + $0x258] sm:$0xff]
        %v696 = vld [vmem:[#allocation7 + $0x260] sm:$0xff]
        %v697 = vld [vmem:[#allocation7 + $0x268] sm:$0xff]
        %v698 = vld [vmem:[#allocation7 + $0x270] sm:$0xff]
        %v699 = vld [vmem:[#allocation7 + $0x278] sm:$0xff]
        %v700 = vld [vmem:[#allocation7 + $0x280] sm:$0xff]
        %v701 = vld [vmem:[#allocation7 + $0x288] sm:$0xff]
        %v702 = vld [vmem:[#allocation7 + $0x290] sm:$0xff]
        %v703 = vld [vmem:[#allocation7 + $0x298] sm:$0xff]
        %v704 = vld [vmem:[#allocation7 + $0x2a0] sm:$0xff]
        %v705 = vld [vmem:[#allocation7 + $0x2a8] sm:$0xff]
        %v706 = vld [vmem:[#allocation7 + $0x2b0] sm:$0xff]
        %v707 = vld [vmem:[#allocation7 + $0x2b8] sm:$0xff]
        %v708 = vld [vmem:[#allocation7 + $0x2c0] sm:$0xff]
        %v709 = vld [vmem:[#allocation7 + $0x2c8] sm:$0xff]
        %v710 = vld [vmem:[#allocation7 + $0x2d0] sm:$0xff]
        %v711 = vld [vmem:[#allocation7 + $0x2d8] sm:$0xff]
        %v712 = vld [vmem:[#allocation7 + $0x2e0] sm:$0xff]
        %v713 = vld [vmem:[#allocation7 + $0x2e8] sm:$0xff]
        %v714 = vld [vmem:[#allocation7 + $0x2f0] sm:$0xff]
        %v715 = vld [vmem:[#allocation7 + $0x2f8] sm:$0xff]
        %v716 = vld [vmem:[#allocation7 + $0x300] sm:$0xff]
        %v717 = vld [vmem:[#allocation7 + $0x308] sm:$0xff]
        %v718 = vld [vmem:[#allocation7 + $0x310] sm:$0xff]
        %v719 = vld [vmem:[#allocation7 + $0x318] sm:$0xff]
        %v720 = vld [vmem:[#allocation7 + $0x320] sm:$0xff]
        %v721 = vld [vmem:[#allocation7 + $0x328] sm:$0xff]
        %v722 = vld [vmem:[#allocation7 + $0x330] sm:$0xff]
        %v723 = vld [vmem:[#allocation7 + $0x338] sm:$0xff]
        %v724 = vld [vmem:[#allocation7 + $0x340] sm:$0xff]
        %v725 = vld [vmem:[#allocation7 + $0x348] sm:$0xff]
        %v726 = vld [vmem:[#allocation7 + $0x350] sm:$0xff]
        %v727 = vld [vmem:[#allocation7 + $0x358] sm:$0xff]
        %v728 = vld [vmem:[#allocation7 + $0x360] sm:$0xff]
        %v729 = vld [vmem:[#allocation7 + $0x368] sm:$0xff]
        %v730 = vld [vmem:[#allocation7 + $0x370] sm:$0xff]
        %v731 = vld [vmem:[#allocation7 + $0x378] sm:$0xff]
        %v732 = vld [vmem:[#allocation7 + $0x380] sm:$0xff]
        %v733 = vld [vmem:[#allocation7 + $0x388] sm:$0xff]
        %v734 = vld [vmem:[#allocation7 + $0x390] sm:$0xff]
        %v735 = vld [vmem:[#allocation7 + $0x398] sm:$0xff]
        %v736 = vld [vmem:[#allocation7 + $0x3a0] sm:$0xff]
        %v737 = vld [vmem:[#allocation7 + $0x3a8] sm:$0xff]
        %v738 = vld [vmem:[#allocation7 + $0x3b0] sm:$0xff]
        %v739 = vld [vmem:[#allocation7 + $0x3b8] sm:$0xff]
        %v740 = vld [vmem:[#allocation7 + $0x3c0] sm:$0xff]
        %v741 = vld [vmem:[#allocation7 + $0x3c8] sm:$0xff]
        %v742 = vld [vmem:[#allocation7 + $0x3d0] sm:$0xff]
        %v743 = vld [vmem:[#allocation7 + $0x3d8] sm:$0xff]
        %v744 = vld [vmem:[#allocation7 + $0x3e0] sm:$0xff]
        %v745 = vld [vmem:[#allocation7 + $0x3e8] sm:$0xff]
        %v746 = vld [vmem:[#allocation7 + $0x3f0] sm:$0xff]
        %v747 = vld [vmem:[#allocation7 + $0x3f8] sm:$0xff]
        %v748 = vld [vmem:[#allocation7 + $0x400] sm:$0xff]
        %v749 = vld [vmem:[#allocation7 + $0x408] sm:$0xff]
        %v750 = vld [vmem:[#allocation7 + $0x410] sm:$0xff]
        %v751 = vld [vmem:[#allocation7 + $0x418] sm:$0xff]
        %v752 = vld [vmem:[#allocation7 + $0x420] sm:$0xff]
        %v753 = vld [vmem:[#allocation7 + $0x428] sm:$0xff]
        %v754 = vld [vmem:[#allocation7 + $0x430] sm:$0xff]
        %v755 = vld [vmem:[#allocation7 + $0x438] sm:$0xff]
        %v756 = vld [vmem:[#allocation7 + $0x440] sm:$0xff]
        %v757 = vld [vmem:[#allocation7 + $0x448] sm:$0xff]
        %v758 = vld [vmem:[#allocation7 + $0x450] sm:$0xff]
        %v759 = vld [vmem:[#allocation7 + $0x458] sm:$0xff]
        %v760 = vld [vmem:[#allocation7 + $0x460] sm:$0xff]
        %v761 = vld [vmem:[#allocation7 + $0x468] sm:$0xff]
        %v762 = vld [vmem:[#allocation7 + $0x470] sm:$0xff]
        %v763 = vld [vmem:[#allocation7 + $0x478] sm:$0xff]
        %764 = vmatpush.msra.mxu0 %v665
        %765 = vmatpush.msra.mxu0 %v662
        %766 = vmatpush.msra.mxu0 %v659
        %767 = vmatpush.msra.mxu0 %v656
        %768 = vmatpush.msra.mxu0 %v653
        %769 = vmatpush.msra.mxu0 %v650
        %770 = vmatpush.msra.mxu0 %v647
        %771 = vmatpush.msra.mxu0 %v644
        %772 = vmatpush.msra.mxu0 %v641
        %773 = vmatpush.msra.mxu0 %v638
        %774 = vmatpush.msra.mxu0 %v635
        %775 = vmatpush.msra.mxu0 %v632
        %776 = vmatpush.msra.mxu0 %v629
        %777 = vmatpush.msra.mxu0 %v626
        %778 = vmatpush.msra.mxu0 %v623
        %779 = vmatpush.msra.mxu0 %v620
        %780 = vmatmul.f32.gmra.mxu0 %v293
        %v781 = vpop.f32.mrf.mxu0
        %v782 = vadd.f32 0.0, %v781
        %783 = vdwg.mxu0
        %784 = vmatpush.msra.mxu0 %v713
        %785 = vmatpush.msra.mxu0 %v710
        %786 = vmatpush.msra.mxu0 %v707
        %787 = vmatpush.msra.mxu0 %v704
        %788 = vmatpush.msra.mxu0 %v701
        %789 = vmatpush.msra.mxu0 %v698
        %790 = vmatpush.msra.mxu0 %v695
        %791 = vmatpush.msra.mxu0 %v692
        %792 = vmatpush.msra.mxu0 %v689
        %793 = vmatpush.msra.mxu0 %v686
        %794 = vmatpush.msra.mxu0 %v683
        %795 = vmatpush.msra.mxu0 %v680
        %796 = vmatpush.msra.mxu0 %v677
        %797 = vmatpush.msra.mxu0 %v674
        %798 = vmatpush.msra.mxu0 %v671
        %799 = vmatpush.msra.mxu0 %v668
        %800 = vmatmul.f32.gmra.mxu0 %v294
        %v801 = vpop.f32.mrf.mxu0
        %v802 = vadd.f32 %v782, %v801
        %803 = vdwg.mxu0
        %804 = vmatpush.msra.mxu0 %v761
        %805 = vmatpush.msra.mxu0 %v758
        %806 = vmatpush.msra.mxu0 %v755
        %807 = vmatpush.msra.mxu0 %v752
        %808 = vmatpush.msra.mxu0 %v749
        %809 = vmatpush.msra.mxu0 %v746
        %810 = vmatpush.msra.mxu0 %v743
        %811 = vmatpush.msra.mxu0 %v740
        %812 = vmatpush.msra.mxu0 %v737
        %813 = vmatpush.msra.mxu0 %v734
        %814 = vmatpush.msra.mxu0 %v731
        %815 = vmatpush.msra.mxu0 %v728
        %816 = vmatpush.msra.mxu0 %v725
        %817 = vmatpush.msra.mxu0 %v722
        %818 = vmatpush.msra.mxu0 %v719
        %819 = vmatpush.msra.mxu0 %v716
        %820 = vmatmul.f32.gmra.mxu0 %v295
        %v821 = vpop.f32.mrf.mxu0
        %v822 = vadd.f32 %v802, %v821
        %823 = vdwg.mxu0
        %824 = vmatpush.msra.mxu0 %v666
        %825 = vmatpush.msra.mxu0 %v663
        %826 = vmatpush.msra.mxu0 %v660
        %827 = vmatpush.msra.mxu0 %v657
        %828 = vmatpush.msra.mxu0 %v654
        %829 = vmatpush.msra.mxu0 %v651
        %830 = vmatpush.msra.mxu0 %v648
        %831 = vmatpush.msra.mxu0 %v645
        %832 = vmatpush.msra.mxu0 %v642
        %833 = vmatpush.msra.mxu0 %v639
        %834 = vmatpush.msra.mxu0 %v636
        %835 = vmatpush.msra.mxu0 %v633
        %836 = vmatpush.msra.mxu0 %v630
        %837 = vmatpush.msra.mxu0 %v627
        %838 = vmatpush.msra.mxu0 %v624
        %839 = vmatpush.msra.mxu0 %v621
        %840 = vmatmul.f32.gmra.mxu0 %v293
        %v841 = vpop.f32.mrf.mxu0
        %v842 = vadd.f32 0.0, %v841
        %843 = vdwg.mxu0
        %844 = vmatpush.msra.mxu0 %v714
        %845 = vmatpush.msra.mxu0 %v711
        %846 = vmatpush.msra.mxu0 %v708
        %847 = vmatpush.msra.mxu0 %v705
        %848 = vmatpush.msra.mxu0 %v702
        %849 = vmatpush.msra.mxu0 %v699
        %850 = vmatpush.msra.mxu0 %v696
        %851 = vmatpush.msra.mxu0 %v693
        %852 = vmatpush.msra.mxu0 %v690
        %853 = vmatpush.msra.mxu0 %v687
        %854 = vmatpush.msra.mxu0 %v684
        %855 = vmatpush.msra.mxu0 %v681
        %856 = vmatpush.msra.mxu0 %v678
        %857 = vmatpush.msra.mxu0 %v675
        %858 = vmatpush.msra.mxu0 %v672
        %859 = vmatpush.msra.mxu0 %v669
        %860 = vmatmul.f32.gmra.mxu0 %v294
        %v861 = vpop.f32.mrf.mxu0
        %v862 = vadd.f32 %v842, %v861
        %863 = vdwg.mxu0
        %864 = vmatpush.msra.mxu0 %v762
        %865 = vmatpush.msra.mxu0 %v759
        %866 = vmatpush.msra.mxu0 %v756
        %867 = vmatpush.msra.mxu0 %v753
        %868 = vmatpush.msra.mxu0 %v750
        %869 = vmatpush.msra.mxu0 %v747
        %870 = vmatpush.msra.mxu0 %v744
        %871 = vmatpush.msra.mxu0 %v741
        %872 = vmatpush.msra.mxu0 %v738
        %873 = vmatpush.msra.mxu0 %v735
        %874 = vmatpush.msra.mxu0 %v732
        %875 = vmatpush.msra.mxu0 %v729
        %876 = vmatpush.msra.mxu0 %v726
        %877 = vmatpush.msra.mxu0 %v723
        %878 = vmatpush.msra.mxu0 %v720
        %879 = vmatpush.msra.mxu0 %v717
        %880 = vmatmul.f32.gmra.mxu0 %v295
        %v881 = vpop.f32.mrf.mxu0
        %v882 = vadd.f32 %v862, %v881
        %883 = vdwg.mxu0
        %884 = vmatpush.msra.mxu0 %v667
        %885 = vmatpush.msra.mxu0 %v664
        %886 = vmatpush.msra.mxu0 %v661
        %887 = vmatpush.msra.mxu0 %v658
        %888 = vmatpush.msra.mxu0 %v655
        %889 = vmatpush.msra.mxu0 %v652
        %890 = vmatpush.msra.mxu0 %v649
        %891 = vmatpush.msra.mxu0 %v646
        %892 = vmatpush.msra.mxu0 %v643
        %893 = vmatpush.msra.mxu0 %v640
        %894 = vmatpush.msra.mxu0 %v637
        %895 = vmatpush.msra.mxu0 %v634
        %896 = vmatpush.msra.mxu0 %v631
        %897 = vmatpush.msra.mxu0 %v628
        %898 = vmatpush.msra.mxu0 %v625
        %899 = vmatpush.msra.mxu0 %v622
        %900 = vmatmul.f32.gmra.mxu0 %v293
        %v901 = vpop.f32.mrf.mxu0
        %v902 = vadd.f32 0.0, %v901
        %903 = vdwg.mxu0
        %904 = vmatpush.msra.mxu0 %v715
        %905 = vmatpush.msra.mxu0 %v712
        %906 = vmatpush.msra.mxu0 %v709
        %907 = vmatpush.msra.mxu0 %v706
        %908 = vmatpush.msra.mxu0 %v703
        %909 = vmatpush.msra.mxu0 %v700
        %910 = vmatpush.msra.mxu0 %v697
        %911 = vmatpush.msra.mxu0 %v694
        %912 = vmatpush.msra.mxu0 %v691
        %913 = vmatpush.msra.mxu0 %v688
        %914 = vmatpush.msra.mxu0 %v685
        %915 = vmatpush.msra.mxu0 %v682
        %916 = vmatpush.msra.mxu0 %v679
        %917 = vmatpush.msra.mxu0 %v676
        %918 = vmatpush.msra.mxu0 %v673
        %919 = vmatpush.msra.mxu0 %v670
        %920 = vmatmul.f32.gmra.mxu0 %v294
        %v921 = vpop.f32.mrf.mxu0
        %v922 = vadd.f32 %v902, %v921
        %923 = vdwg.mxu0
        %924 = vmatpush.msra.mxu0 %v763
        %925 = vmatpush.msra.mxu0 %v760
        %926 = vmatpush.msra.mxu0 %v757
        %927 = vmatpush.msra.mxu0 %v754
        %928 = vmatpush.msra.mxu0 %v751
        %929 = vmatpush.msra.mxu0 %v748
        %930 = vmatpush.msra.mxu0 %v745
        %931 = vmatpush.msra.mxu0 %v742
        %932 = vmatpush.msra.mxu0 %v739
        %933 = vmatpush.msra.mxu0 %v736
        %934 = vmatpush.msra.mxu0 %v733
        %935 = vmatpush.msra.mxu0 %v730
        %936 = vmatpush.msra.mxu0 %v727
        %937 = vmatpush.msra.mxu0 %v724
        %938 = vmatpush.msra.mxu0 %v721
        %939 = vmatpush.msra.mxu0 %v718
        %940 = vmatmul.f32.gmra.mxu0 %v295
        %v941 = vpop.f32.mrf.mxu0
        %v942 = vadd.f32 %v922, %v941
        %943 = vdwg.mxu0
        %v944 = vlaneseq
        %v945 = vshrl.u32 %v944, 7
        %v946 = vlaneseq
        %v947 = vand.u32 %v946, 127
        %vm948 = vcmp.le.s32.totalorder %v947, %v945
        %v949 = vsel %vm948, 0.0, -1e+30
        %v950 = vmul.f32 %v498, 0.125
        %vm951 = vcmask 523264
        %v953 = vsel %vm951, %v950, 0
        %v956 = vsel %vm951, %v498, 0
        %958 = vmatpush.xpose.msra.mxu0 0.0
        %959 = vmatpush.xpose.msra.mxu0 0.0
        %960 = vmatpush.xpose.msra.mxu0 0.0
        %961 = vmatpush.xpose.msra.mxu0 0.0
        %962 = vmatpush.xpose.msra.mxu0 0.0
        %963 = vmatpush.xpose.msra.mxu0 0.0
        %964 = vmatpush.xpose.msra.mxu0 0.0
        %965 = vmatpush.xpose.msra.mxu0 0.0
        %966 = vmatpush.xpose.msra.mxu0 0.0
        %967 = vmatpush.xpose.msra.mxu0 0.0
        %968 = vmatpush.xpose.msra.mxu0 0.0
        %969 = vmatpush.xpose.msra.mxu0 0.0
        %970 = vmatpush.xpose.msra.mxu0 0.0
        %971 = vmatpush.xpose.msra.mxu0 0.0
        %972 = vmatpush.xpose.msra.mxu0 0.0
        %973 = vmatpush.xpose.msra.mxu0 %v956
        %974 = vmatmul.f32.gmra.mxu0 %v953
        %v975 = vpop.f32.mrf.mxu0
        %v976 = vadd.f32 %v949, %v975
        %977 = vdwg.mxu0
        %vm978 = vcmask 64512
        %v979 = vsel %vm978, %v976, -inf
        %980 = vmax.xlane.f32.xlu0 %v979
        %v981 = vpop.xlane.xlu0 %980
        %v982 = vsub.f32 %v976, %v981
        %v983 = vmul.f32 %v982, 1.442695
        %v984 = vpow.pop %v983
        %v985 = vsel %vm978, %v984, 0.0
        %986 = vadd.xlane.f32.xlu0 %v985
        %v987 = vpop.xlane.xlu0 %986
        %v988 = vrcp.pop %v987
        %v989 = vmul.f32 %v984, %v988
        %v991 = vsel %vm978, %v989, 0
        %993 = vmatpush.msra.mxu0 0.0
        %994 = vmatpush.msra.mxu0 0.0
        %995 = vmatpush.msra.mxu0 0.0
        %996 = vmatpush.msra.mxu0 0.0
        %997 = vmatpush.msra.mxu0 0.0
        %998 = vmatpush.msra.mxu0 0.0
        %999 = vmatpush.msra.mxu0 0.0
        %1000 = vmatpush.msra.mxu0 0.0
        %1001 = vmatpush.msra.mxu0 0.0
        %1002 = vmatpush.msra.mxu0 0.0
        %1003 = vmatpush.msra.mxu0 0.0
        %1004 = vmatpush.msra.mxu0 0.0
        %1005 = vmatpush.msra.mxu0 0.0
        %1006 = vmatpush.msra.mxu0 0.0
        %1007 = vmatpush.msra.mxu0 0.0
        %1008 = vmatpush.msra.mxu0 %v822
        %1009 = vmatmul.f32.gmra.mxu0 %v991
        %v1010 = vpop.f32.mrf.mxu0
        %v1011 = vadd.f32 0.0, %v1010
        %1012 = vdwg.mxu0
        %1013 = vrot.lane.b32.xlu0 %v950, 64
        %v1014 = vpop.permute.xlu0 %1013
        %1015 = vrot.lane.b32.xlu0 %v498, 64
        %v1016 = vpop.permute.xlu0 %1015
        %v1017 = vsel %vm951, %v1014, 0
        %v1019 = vsel %vm951, %v1016, 0
        %1021 = vmatpush.xpose.msra.mxu0 0.0
        %1022 = vmatpush.xpose.msra.mxu0 0.0
        %1023 = vmatpush.xpose.msra.mxu0 0.0
        %1024 = vmatpush.xpose.msra.mxu0 0.0
        %1025 = vmatpush.xpose.msra.mxu0 0.0
        %1026 = vmatpush.xpose.msra.mxu0 0.0
        %1027 = vmatpush.xpose.msra.mxu0 0.0
        %1028 = vmatpush.xpose.msra.mxu0 0.0
        %1029 = vmatpush.xpose.msra.mxu0 0.0
        %1030 = vmatpush.xpose.msra.mxu0 0.0
        %1031 = vmatpush.xpose.msra.mxu0 0.0
        %1032 = vmatpush.xpose.msra.mxu0 0.0
        %1033 = vmatpush.xpose.msra.mxu0 0.0
        %1034 = vmatpush.xpose.msra.mxu0 0.0
        %1035 = vmatpush.xpose.msra.mxu0 0.0
        %1036 = vmatpush.xpose.msra.mxu0 %v1019
        %1037 = vmatmul.f32.gmra.mxu0 %v1017
        %v1038 = vpop.f32.mrf.mxu0
        %v1039 = vadd.f32 %v949, %v1038
        %1040 = vdwg.mxu0
        %v1041 = vsel %vm978, %v1039, -inf
        %1042 = vmax.xlane.f32.xlu0 %v1041
        %v1043 = vpop.xlane.xlu0 %1042
        %v1044 = vsub.f32 %v1039, %v1043
        %v1045 = vmul.f32 %v1044, 1.442695
        %v1046 = vpow.pop %v1045
        %v1047 = vsel %vm978, %v1046, 0.0
        %1048 = vadd.xlane.f32.xlu0 %v1047
        %v1049 = vpop.xlane.xlu0 %1048
        %v1050 = vrcp.pop %v1049
        %v1051 = vmul.f32 %v1046, %v1050
        %1053 = vrot.lane.b32.xlu0 %v822, 64
        %v1054 = vpop.permute.xlu0 %1053
        %v1057 = vsel %vm978, %v1051, 0
        %1059 = vmatpush.msra.mxu0 0.0
        %1060 = vmatpush.msra.mxu0 0.0
        %1061 = vmatpush.msra.mxu0 0.0
        %1062 = vmatpush.msra.mxu0 0.0
        %1063 = vmatpush.msra.mxu0 0.0
        %1064 = vmatpush.msra.mxu0 0.0
        %1065 = vmatpush.msra.mxu0 0.0
        %1066 = vmatpush.msra.mxu0 0.0
        %1067 = vmatpush.msra.mxu0 0.0
        %1068 = vmatpush.msra.mxu0 0.0
        %1069 = vmatpush.msra.mxu0 0.0
        %1070 = vmatpush.msra.mxu0 0.0
        %1071 = vmatpush.msra.mxu0 0.0
        %1072 = vmatpush.msra.mxu0 0.0
        %1073 = vmatpush.msra.mxu0 0.0
        %1074 = vmatpush.msra.mxu0 %v1054
        %1075 = vmatmul.f32.gmra.mxu0 %v1057
        %v1076 = vpop.f32.mrf.mxu0
        %v1077 = vadd.f32 0.0, %v1076
        %1078 = vdwg.mxu0
        %v1079 = vmul.f32 %v558, 0.125
        %v1081 = vsel %vm951, %v1079, 0
        %v1084 = vsel %vm951, %v558, 0
        %1086 = vmatpush.xpose.msra.mxu0 0.0
        %1087 = vmatpush.xpose.msra.mxu0 0.0
        %1088 = vmatpush.xpose.msra.mxu0 0.0
        %1089 = vmatpush.xpose.msra.mxu0 0.0
        %1090 = vmatpush.xpose.msra.mxu0 0.0
        %1091 = vmatpush.xpose.msra.mxu0 0.0
        %1092 = vmatpush.xpose.msra.mxu0 0.0
        %1093 = vmatpush.xpose.msra.mxu0 0.0
        %1094 = vmatpush.xpose.msra.mxu0 0.0
        %1095 = vmatpush.xpose.msra.mxu0 0.0
        %1096 = vmatpush.xpose.msra.mxu0 0.0
        %1097 = vmatpush.xpose.msra.mxu0 0.0
        %1098 = vmatpush.xpose.msra.mxu0 0.0
        %1099 = vmatpush.xpose.msra.mxu0 0.0
        %1100 = vmatpush.xpose.msra.mxu0 0.0
        %1101 = vmatpush.xpose.msra.mxu0 %v1084
        %1102 = vmatmul.f32.gmra.mxu0 %v1081
        %v1103 = vpop.f32.mrf.mxu0
        %v1104 = vadd.f32 %v949, %v1103
        %1105 = vdwg.mxu0
        %v1106 = vsel %vm978, %v1104, -inf
        %1107 = vmax.xlane.f32.xlu0 %v1106
        %v1108 = vpop.xlane.xlu0 %1107
        %v1109 = vsub.f32 %v1104, %v1108
        %v1110 = vmul.f32 %v1109, 1.442695
        %v1111 = vpow.pop %v1110
        %v1112 = vsel %vm978, %v1111, 0.0
        %1113 = vadd.xlane.f32.xlu0 %v1112
        %v1114 = vpop.xlane.xlu0 %1113
        %v1115 = vrcp.pop %v1114
        %v1116 = vmul.f32 %v1111, %v1115
        %v1118 = vsel %vm978, %v1116, 0
        %1120 = vmatpush.msra.mxu0 0.0
        %1121 = vmatpush.msra.mxu0 0.0
        %1122 = vmatpush.msra.mxu0 0.0
        %1123 = vmatpush.msra.mxu0 0.0
        %1124 = vmatpush.msra.mxu0 0.0
        %1125 = vmatpush.msra.mxu0 0.0
        %1126 = vmatpush.msra.mxu0 0.0
        %1127 = vmatpush.msra.mxu0 0.0
        %1128 = vmatpush.msra.mxu0 0.0
        %1129 = vmatpush.msra.mxu0 0.0
        %1130 = vmatpush.msra.mxu0 0.0
        %1131 = vmatpush.msra.mxu0 0.0
        %1132 = vmatpush.msra.mxu0 0.0
        %1133 = vmatpush.msra.mxu0 0.0
        %1134 = vmatpush.msra.mxu0 0.0
        %1135 = vmatpush.msra.mxu0 %v882
        %1136 = vmatmul.f32.gmra.mxu0 %v1118
        %v1137 = vpop.f32.mrf.mxu0
        %v1138 = vadd.f32 0.0, %v1137
        %1139 = vdwg.mxu0
        %1140 = vrot.lane.b32.xlu0 %v1079, 64
        %v1141 = vpop.permute.xlu0 %1140
        %1142 = vrot.lane.b32.xlu0 %v558, 64
        %v1143 = vpop.permute.xlu0 %1142
        %v1144 = vsel %vm951, %v1141, 0
        %v1146 = vsel %vm951, %v1143, 0
        %1148 = vmatpush.xpose.msra.mxu0 0.0
        %1149 = vmatpush.xpose.msra.mxu0 0.0
        %1150 = vmatpush.xpose.msra.mxu0 0.0
        %1151 = vmatpush.xpose.msra.mxu0 0.0
        %1152 = vmatpush.xpose.msra.mxu0 0.0
        %1153 = vmatpush.xpose.msra.mxu0 0.0
        %1154 = vmatpush.xpose.msra.mxu0 0.0
        %1155 = vmatpush.xpose.msra.mxu0 0.0
        %1156 = vmatpush.xpose.msra.mxu0 0.0
        %1157 = vmatpush.xpose.msra.mxu0 0.0
        %1158 = vmatpush.xpose.msra.mxu0 0.0
        %1159 = vmatpush.xpose.msra.mxu0 0.0
        %1160 = vmatpush.xpose.msra.mxu0 0.0
        %1161 = vmatpush.xpose.msra.mxu0 0.0
        %1162 = vmatpush.xpose.msra.mxu0 0.0
        %1163 = vmatpush.xpose.msra.mxu0 %v1146
        %1164 = vmatmul.f32.gmra.mxu0 %v1144
        %v1165 = vpop.f32.mrf.mxu0
        %v1166 = vadd.f32 %v949, %v1165
        %1167 = vdwg.mxu0
        %v1168 = vsel %vm978, %v1166, -inf
        %1169 = vmax.xlane.f32.xlu0 %v1168
        %v1170 = vpop.xlane.xlu0 %1169
        %v1171 = vsub.f32 %v1166, %v1170
        %v1172 = vmul.f32 %v1171, 1.442695
        %v1173 = vpow.pop %v1172
        %v1174 = vsel %vm978, %v1173, 0.0
        %1175 = vadd.xlane.f32.xlu0 %v1174
        %v1176 = vpop.xlane.xlu0 %1175
        %v1177 = vrcp.pop %v1176
        %v1178 = vmul.f32 %v1173, %v1177
        %1180 = vrot.lane.b32.xlu0 %v882, 64
        %v1181 = vpop.permute.xlu0 %1180
        %v1184 = vsel %vm978, %v1178, 0
        %1186 = vmatpush.msra.mxu0 0.0
        %1187 = vmatpush.msra.mxu0 0.0
        %1188 = vmatpush.msra.mxu0 0.0
        %1189 = vmatpush.msra.mxu0 0.0
        %1190 = vmatpush.msra.mxu0 0.0
        %1191 = vmatpush.msra.mxu0 0.0
        %1192 = vmatpush.msra.mxu0 0.0
        %1193 = vmatpush.msra.mxu0 0.0
        %1194 = vmatpush.msra.mxu0 0.0
        %1195 = vmatpush.msra.mxu0 0.0
        %1196 = vmatpush.msra.mxu0 0.0
        %1197 = vmatpush.msra.mxu0 0.0
        %1198 = vmatpush.msra.mxu0 0.0
        %1199 = vmatpush.msra.mxu0 0.0
        %1200 = vmatpush.msra.mxu0 0.0
        %1201 = vmatpush.msra.mxu0 %v1181
        %1202 = vmatmul.f32.gmra.mxu0 %v1184
        %v1203 = vpop.f32.mrf.mxu0
        %v1204 = vadd.f32 0.0, %v1203
        %1205 = vdwg.mxu0
        %v1206 = vmul.f32 %v618, 0.125
        %v1208 = vsel %vm951, %v1206, 0
        %v1211 = vsel %vm951, %v618, 0
        %1213 = vmatpush.xpose.msra.mxu0 0.0
        %1214 = vmatpush.xpose.msra.mxu0 0.0
        %1215 = vmatpush.xpose.msra.mxu0 0.0
        %1216 = vmatpush.xpose.msra.mxu0 0.0
        %1217 = vmatpush.xpose.msra.mxu0 0.0
        %1218 = vmatpush.xpose.msra.mxu0 0.0
        %1219 = vmatpush.xpose.msra.mxu0 0.0
        %1220 = vmatpush.xpose.msra.mxu0 0.0
        %1221 = vmatpush.xpose.msra.mxu0 0.0
        %1222 = vmatpush.xpose.msra.mxu0 0.0
        %1223 = vmatpush.xpose.msra.mxu0 0.0
        %1224 = vmatpush.xpose.msra.mxu0 0.0
        %1225 = vmatpush.xpose.msra.mxu0 0.0
        %1226 = vmatpush.xpose.msra.mxu0 0.0
        %1227 = vmatpush.xpose.msra.mxu0 0.0
        %1228 = vmatpush.xpose.msra.mxu0 %v1211
        %1229 = vmatmul.f32.gmra.mxu0 %v1208
        %v1230 = vpop.f32.mrf.mxu0
        %v1231 = vadd.f32 %v949, %v1230
        %1232 = vdwg.mxu0
        %v1233 = vsel %vm978, %v1231, -inf
        %1234 = vmax.xlane.f32.xlu0 %v1233
        %v1235 = vpop.xlane.xlu0 %1234
        %v1236 = vsub.f32 %v1231, %v1235
        %v1237 = vmul.f32 %v1236, 1.442695
        %v1238 = vpow.pop %v1237
        %v1239 = vsel %vm978, %v1238, 0.0
        %1240 = vadd.xlane.f32.xlu0 %v1239
        %v1241 = vpop.xlane.xlu0 %1240
        %v1242 = vrcp.pop %v1241
        %v1243 = vmul.f32 %v1238, %v1242
        %v1245 = vsel %vm978, %v1243, 0
        %1247 = vmatpush.msra.mxu0 0.0
        %1248 = vmatpush.msra.mxu0 0.0
        %1249 = vmatpush.msra.mxu0 0.0
        %1250 = vmatpush.msra.mxu0 0.0
        %1251 = vmatpush.msra.mxu0 0.0
        %1252 = vmatpush.msra.mxu0 0.0
        %1253 = vmatpush.msra.mxu0 0.0
        %1254 = vmatpush.msra.mxu0 0.0
        %1255 = vmatpush.msra.mxu0 0.0
        %1256 = vmatpush.msra.mxu0 0.0
        %1257 = vmatpush.msra.mxu0 0.0
        %1258 = vmatpush.msra.mxu0 0.0
        %1259 = vmatpush.msra.mxu0 0.0
        %1260 = vmatpush.msra.mxu0 0.0
        %1261 = vmatpush.msra.mxu0 0.0
        %1262 = vmatpush.msra.mxu0 %v942
        %1263 = vmatmul.f32.gmra.mxu0 %v1245
        %v1264 = vpop.f32.mrf.mxu0
        %v1265 = vadd.f32 0.0, %v1264
        %1266 = vdwg.mxu0
        %1267 = vrot.lane.b32.xlu0 %v1206, 64
        %v1268 = vpop.permute.xlu0 %1267
        %1269 = vrot.lane.b32.xlu0 %v618, 64
        %v1270 = vpop.permute.xlu0 %1269
        %v1271 = vsel %vm951, %v1268, 0
        %v1273 = vsel %vm951, %v1270, 0
        %1275 = vmatpush.xpose.msra.mxu0 0.0
        %1276 = vmatpush.xpose.msra.mxu0 0.0
        %1277 = vmatpush.xpose.msra.mxu0 0.0
        %1278 = vmatpush.xpose.msra.mxu0 0.0
        %1279 = vmatpush.xpose.msra.mxu0 0.0
        %1280 = vmatpush.xpose.msra.mxu0 0.0
        %1281 = vmatpush.xpose.msra.mxu0 0.0
        %1282 = vmatpush.xpose.msra.mxu0 0.0
        %1283 = vmatpush.xpose.msra.mxu0 0.0
        %1284 = vmatpush.xpose.msra.mxu0 0.0
        %1285 = vmatpush.xpose.msra.mxu0 0.0
        %1286 = vmatpush.xpose.msra.mxu0 0.0
        %1287 = vmatpush.xpose.msra.mxu0 0.0
        %1288 = vmatpush.xpose.msra.mxu0 0.0
        %1289 = vmatpush.xpose.msra.mxu0 0.0
        %1290 = vmatpush.xpose.msra.mxu0 %v1273
        %1291 = vmatmul.f32.gmra.mxu0 %v1271
        %v1292 = vpop.f32.mrf.mxu0
        %v1293 = vadd.f32 %v949, %v1292
        %1294 = vdwg.mxu0
        %v1295 = vsel %vm978, %v1293, -inf
        %1296 = vmax.xlane.f32.xlu0 %v1295
        %v1297 = vpop.xlane.xlu0 %1296
        %v1298 = vsub.f32 %v1293, %v1297
        %v1299 = vmul.f32 %v1298, 1.442695
        %v1300 = vpow.pop %v1299
        %v1301 = vsel %vm978, %v1300, 0.0
        %1302 = vadd.xlane.f32.xlu0 %v1301
        %v1303 = vpop.xlane.xlu0 %1302
        %v1304 = vrcp.pop %v1303
        %v1305 = vmul.f32 %v1300, %v1304
        %1307 = vrot.lane.b32.xlu0 %v942, 64
        %v1308 = vpop.permute.xlu0 %1307
        %v1311 = vsel %vm978, %v1305, 0
        %1313 = vmatpush.msra.mxu0 0.0
        %1314 = vmatpush.msra.mxu0 0.0
        %1315 = vmatpush.msra.mxu0 0.0
        %1316 = vmatpush.msra.mxu0 0.0
        %1317 = vmatpush.msra.mxu0 0.0
        %1318 = vmatpush.msra.mxu0 0.0
        %1319 = vmatpush.msra.mxu0 0.0
        %1320 = vmatpush.msra.mxu0 0.0
        %1321 = vmatpush.msra.mxu0 0.0
        %1322 = vmatpush.msra.mxu0 0.0
        %1323 = vmatpush.msra.mxu0 0.0
        %1324 = vmatpush.msra.mxu0 0.0
        %1325 = vmatpush.msra.mxu0 0.0
        %1326 = vmatpush.msra.mxu0 0.0
        %1327 = vmatpush.msra.mxu0 0.0
        %1328 = vmatpush.msra.mxu0 %v1308
        %1329 = vmatmul.f32.gmra.mxu0 %v1311
        %v1330 = vpop.f32.mrf.mxu0
        %v1331 = vadd.f32 0.0, %v1330
        %1332 = vdwg.mxu0
        %1334 = vrot.lane.b32.xlu0 %v1077, 64
        %v1335 = vpop.permute.xlu0 %1334
        %1338 = vrot.lane.b32.xlu0 %v1204, 64
        %v1339 = vpop.permute.xlu0 %1338
        %1342 = vrot.lane.b32.xlu0 %v1331, 64
        %v1343 = vpop.permute.xlu0 %1342
        %v1345 = vsel %vm951, %v1011, %v1335
        %v1346 = vsel %vm951, %v1138, %v1339
        %v1347 = vsel %vm951, %v1265, %v1343
        %v1348 = vld [vmem:[#allocation8] sm:$0xff]
        %v1349 = vld [vmem:[#allocation8 + $0x8] sm:$0xff]
        %v1350 = vld [vmem:[#allocation8 + $0x10] sm:$0xff]
        %v1351 = vld [vmem:[#allocation8 + $0x18] sm:$0xff]
        %v1352 = vld [vmem:[#allocation8 + $0x20] sm:$0xff]
        %v1353 = vld [vmem:[#allocation8 + $0x28] sm:$0xff]
        %v1354 = vld [vmem:[#allocation8 + $0x30] sm:$0xff]
        %v1355 = vld [vmem:[#allocation8 + $0x38] sm:$0xff]
        %v1356 = vld [vmem:[#allocation8 + $0x40] sm:$0xff]
        %v1357 = vld [vmem:[#allocation8 + $0x48] sm:$0xff]
        %v1358 = vld [vmem:[#allocation8 + $0x50] sm:$0xff]
        %v1359 = vld [vmem:[#allocation8 + $0x58] sm:$0xff]
        %v1360 = vld [vmem:[#allocation8 + $0x60] sm:$0xff]
        %v1361 = vld [vmem:[#allocation8 + $0x68] sm:$0xff]
        %v1362 = vld [vmem:[#allocation8 + $0x70] sm:$0xff]
        %v1363 = vld [vmem:[#allocation8 + $0x78] sm:$0xff]
        %v1364 = vld [vmem:[#allocation8 + $0x80] sm:$0xff]
        %v1365 = vld [vmem:[#allocation8 + $0x88] sm:$0xff]
        %v1366 = vld [vmem:[#allocation8 + $0x90] sm:$0xff]
        %v1367 = vld [vmem:[#allocation8 + $0x98] sm:$0xff]
        %v1368 = vld [vmem:[#allocation8 + $0xa0] sm:$0xff]
        %v1369 = vld [vmem:[#allocation8 + $0xa8] sm:$0xff]
        %v1370 = vld [vmem:[#allocation8 + $0xb0] sm:$0xff]
        %v1371 = vld [vmem:[#allocation8 + $0xb8] sm:$0xff]
        %v1372 = vld [vmem:[#allocation8 + $0xc0] sm:$0xff]
        %v1373 = vld [vmem:[#allocation8 + $0xc8] sm:$0xff]
        %v1374 = vld [vmem:[#allocation8 + $0xd0] sm:$0xff]
        %v1375 = vld [vmem:[#allocation8 + $0xd8] sm:$0xff]
        %v1376 = vld [vmem:[#allocation8 + $0xe0] sm:$0xff]
        %v1377 = vld [vmem:[#allocation8 + $0xe8] sm:$0xff]
        %v1378 = vld [vmem:[#allocation8 + $0xf0] sm:$0xff]
        %v1379 = vld [vmem:[#allocation8 + $0xf8] sm:$0xff]
        %v1380 = vld [vmem:[#allocation8 + $0x100] sm:$0xff]
        %v1381 = vld [vmem:[#allocation8 + $0x108] sm:$0xff]
        %v1382 = vld [vmem:[#allocation8 + $0x110] sm:$0xff]
        %v1383 = vld [vmem:[#allocation8 + $0x118] sm:$0xff]
        %v1384 = vld [vmem:[#allocation8 + $0x120] sm:$0xff]
        %v1385 = vld [vmem:[#allocation8 + $0x128] sm:$0xff]
        %v1386 = vld [vmem:[#allocation8 + $0x130] sm:$0xff]
        %v1387 = vld [vmem:[#allocation8 + $0x138] sm:$0xff]
        %v1388 = vld [vmem:[#allocation8 + $0x140] sm:$0xff]
        %v1389 = vld [vmem:[#allocation8 + $0x148] sm:$0xff]
        %v1390 = vld [vmem:[#allocation8 + $0x150] sm:$0xff]
        %v1391 = vld [vmem:[#allocation8 + $0x158] sm:$0xff]
        %v1392 = vld [vmem:[#allocation8 + $0x160] sm:$0xff]
        %v1393 = vld [vmem:[#allocation8 + $0x168] sm:$0xff]
        %v1394 = vld [vmem:[#allocation8 + $0x170] sm:$0xff]
        %v1395 = vld [vmem:[#allocation8 + $0x178] sm:$0xff]
        %v1396 = vld [vmem:[#allocation8 + $0x180] sm:$0xff]
        %v1397 = vld [vmem:[#allocation8 + $0x188] sm:$0xff]
        %v1398 = vld [vmem:[#allocation8 + $0x190] sm:$0xff]
        %v1399 = vld [vmem:[#allocation8 + $0x198] sm:$0xff]
        %v1400 = vld [vmem:[#allocation8 + $0x1a0] sm:$0xff]
        %v1401 = vld [vmem:[#allocation8 + $0x1a8] sm:$0xff]
        %v1402 = vld [vmem:[#allocation8 + $0x1b0] sm:$0xff]
        %v1403 = vld [vmem:[#allocation8 + $0x1b8] sm:$0xff]
        %v1404 = vld [vmem:[#allocation8 + $0x1c0] sm:$0xff]
        %v1405 = vld [vmem:[#allocation8 + $0x1c8] sm:$0xff]
        %v1406 = vld [vmem:[#allocation8 + $0x1d0] sm:$0xff]
        %v1407 = vld [vmem:[#allocation8 + $0x1d8] sm:$0xff]
        %v1408 = vld [vmem:[#allocation8 + $0x1e0] sm:$0xff]
        %v1409 = vld [vmem:[#allocation8 + $0x1e8] sm:$0xff]
        %v1410 = vld [vmem:[#allocation8 + $0x1f0] sm:$0xff]
        %v1411 = vld [vmem:[#allocation8 + $0x1f8] sm:$0xff]
        %v1412 = vld [vmem:[#allocation8 + $0x200] sm:$0xff]
        %v1413 = vld [vmem:[#allocation8 + $0x208] sm:$0xff]
        %v1414 = vld [vmem:[#allocation8 + $0x210] sm:$0xff]
        %v1415 = vld [vmem:[#allocation8 + $0x218] sm:$0xff]
        %v1416 = vld [vmem:[#allocation8 + $0x220] sm:$0xff]
        %v1417 = vld [vmem:[#allocation8 + $0x228] sm:$0xff]
        %v1418 = vld [vmem:[#allocation8 + $0x230] sm:$0xff]
        %v1419 = vld [vmem:[#allocation8 + $0x238] sm:$0xff]
        %v1420 = vld [vmem:[#allocation8 + $0x240] sm:$0xff]
        %v1421 = vld [vmem:[#allocation8 + $0x248] sm:$0xff]
        %v1422 = vld [vmem:[#allocation8 + $0x250] sm:$0xff]
        %v1423 = vld [vmem:[#allocation8 + $0x258] sm:$0xff]
        %v1424 = vld [vmem:[#allocation8 + $0x260] sm:$0xff]
        %v1425 = vld [vmem:[#allocation8 + $0x268] sm:$0xff]
        %v1426 = vld [vmem:[#allocation8 + $0x270] sm:$0xff]
        %v1427 = vld [vmem:[#allocation8 + $0x278] sm:$0xff]
        %v1428 = vld [vmem:[#allocation8 + $0x280] sm:$0xff]
        %v1429 = vld [vmem:[#allocation8 + $0x288] sm:$0xff]
        %v1430 = vld [vmem:[#allocation8 + $0x290] sm:$0xff]
        %v1431 = vld [vmem:[#allocation8 + $0x298] sm:$0xff]
        %v1432 = vld [vmem:[#allocation8 + $0x2a0] sm:$0xff]
        %v1433 = vld [vmem:[#allocation8 + $0x2a8] sm:$0xff]
        %v1434 = vld [vmem:[#allocation8 + $0x2b0] sm:$0xff]
        %v1435 = vld [vmem:[#allocation8 + $0x2b8] sm:$0xff]
        %v1436 = vld [vmem:[#allocation8 + $0x2c0] sm:$0xff]
        %v1437 = vld [vmem:[#allocation8 + $0x2c8] sm:$0xff]
        %v1438 = vld [vmem:[#allocation8 + $0x2d0] sm:$0xff]
        %v1439 = vld [vmem:[#allocation8 + $0x2d8] sm:$0xff]
        %v1440 = vld [vmem:[#allocation8 + $0x2e0] sm:$0xff]
        %v1441 = vld [vmem:[#allocation8 + $0x2e8] sm:$0xff]
        %v1442 = vld [vmem:[#allocation8 + $0x2f0] sm:$0xff]
        %v1443 = vld [vmem:[#allocation8 + $0x2f8] sm:$0xff]
        %v1444 = vld [vmem:[#allocation8 + $0x300] sm:$0xff]
        %v1445 = vld [vmem:[#allocation8 + $0x308] sm:$0xff]
        %v1446 = vld [vmem:[#allocation8 + $0x310] sm:$0xff]
        %v1447 = vld [vmem:[#allocation8 + $0x318] sm:$0xff]
        %v1448 = vld [vmem:[#allocation8 + $0x320] sm:$0xff]
        %v1449 = vld [vmem:[#allocation8 + $0x328] sm:$0xff]
        %v1450 = vld [vmem:[#allocation8 + $0x330] sm:$0xff]
        %v1451 = vld [vmem:[#allocation8 + $0x338] sm:$0xff]
        %v1452 = vld [vmem:[#allocation8 + $0x340] sm:$0xff]
        %v1453 = vld [vmem:[#allocation8 + $0x348] sm:$0xff]
        %v1454 = vld [vmem:[#allocation8 + $0x350] sm:$0xff]
        %v1455 = vld [vmem:[#allocation8 + $0x358] sm:$0xff]
        %v1456 = vld [vmem:[#allocation8 + $0x360] sm:$0xff]
        %v1457 = vld [vmem:[#allocation8 + $0x368] sm:$0xff]
        %v1458 = vld [vmem:[#allocation8 + $0x370] sm:$0xff]
        %v1459 = vld [vmem:[#allocation8 + $0x378] sm:$0xff]
        %v1460 = vld [vmem:[#allocation8 + $0x380] sm:$0xff]
        %v1461 = vld [vmem:[#allocation8 + $0x388] sm:$0xff]
        %v1462 = vld [vmem:[#allocation8 + $0x390] sm:$0xff]
        %v1463 = vld [vmem:[#allocation8 + $0x398] sm:$0xff]
        %v1464 = vld [vmem:[#allocation8 + $0x3a0] sm:$0xff]
        %v1465 = vld [vmem:[#allocation8 + $0x3a8] sm:$0xff]
        %v1466 = vld [vmem:[#allocation8 + $0x3b0] sm:$0xff]
        %v1467 = vld [vmem:[#allocation8 + $0x3b8] sm:$0xff]
        %v1468 = vld [vmem:[#allocation8 + $0x3c0] sm:$0xff]
        %v1469 = vld [vmem:[#allocation8 + $0x3c8] sm:$0xff]
        %v1470 = vld [vmem:[#allocation8 + $0x3d0] sm:$0xff]
        %v1471 = vld [vmem:[#allocation8 + $0x3d8] sm:$0xff]
        %v1472 = vld [vmem:[#allocation8 + $0x3e0] sm:$0xff]
        %v1473 = vld [vmem:[#allocation8 + $0x3e8] sm:$0xff]
        %v1474 = vld [vmem:[#allocation8 + $0x3f0] sm:$0xff]
        %v1475 = vld [vmem:[#allocation8 + $0x3f8] sm:$0xff]
        %v1476 = vld [vmem:[#allocation8 + $0x400] sm:$0xff]
        %v1477 = vld [vmem:[#allocation8 + $0x408] sm:$0xff]
        %v1478 = vld [vmem:[#allocation8 + $0x410] sm:$0xff]
        %v1479 = vld [vmem:[#allocation8 + $0x418] sm:$0xff]
        %v1480 = vld [vmem:[#allocation8 + $0x420] sm:$0xff]
        %v1481 = vld [vmem:[#allocation8 + $0x428] sm:$0xff]
        %v1482 = vld [vmem:[#allocation8 + $0x430] sm:$0xff]
        %v1483 = vld [vmem:[#allocation8 + $0x438] sm:$0xff]
        %v1484 = vld [vmem:[#allocation8 + $0x440] sm:$0xff]
        %v1485 = vld [vmem:[#allocation8 + $0x448] sm:$0xff]
        %v1486 = vld [vmem:[#allocation8 + $0x450] sm:$0xff]
        %v1487 = vld [vmem:[#allocation8 + $0x458] sm:$0xff]
        %v1488 = vld [vmem:[#allocation8 + $0x460] sm:$0xff]
        %v1489 = vld [vmem:[#allocation8 + $0x468] sm:$0xff]
        %v1490 = vld [vmem:[#allocation8 + $0x470] sm:$0xff]
        %v1491 = vld [vmem:[#allocation8 + $0x478] sm:$0xff]
        %v1492 = vld [vmem:[%s4] sm:$0x7]
        %v1494 = vperm.slane %v1492, 0
        %v1495 = vperm.slane %v1492, 1
        %v1496 = vperm.slane %v1492, 2
        %1500 = vmatpush.msra.mxu0 %v1393
        %1501 = vmatpush.msra.mxu0 %v1390
        %1502 = vmatpush.msra.mxu0 %v1387
        %1503 = vmatpush.msra.mxu0 %v1384
        %1504 = vmatpush.msra.mxu0 %v1381
        %1505 = vmatpush.msra.mxu0 %v1378
        %1506 = vmatpush.msra.mxu0 %v1375
        %1507 = vmatpush.msra.mxu0 %v1372
        %1508 = vmatpush.msra.mxu0 %v1369
        %1509 = vmatpush.msra.mxu0 %v1366
        %1510 = vmatpush.msra.mxu0 %v1363
        %1511 = vmatpush.msra.mxu0 %v1360
        %1512 = vmatpush.msra.mxu0 %v1357
        %1513 = vmatpush.msra.mxu0 %v1354
        %1514 = vmatpush.msra.mxu0 %v1351
        %1515 = vmatpush.msra.mxu0 %v1348
        %1516 = vmatmul.f32.gmra.mxu0 %v1345
        %v1517 = vpop.f32.mrf.mxu0
        %v1518 = vadd.f32 %v1494, %v1517
        %1519 = vdwg.mxu0
        %1520 = vmatpush.msra.mxu0 %v1441
        %1521 = vmatpush.msra.mxu0 %v1438
        %1522 = vmatpush.msra.mxu0 %v1435
        %1523 = vmatpush.msra.mxu0 %v1432
        %1524 = vmatpush.msra.mxu0 %v1429
        %1525 = vmatpush.msra.mxu0 %v1426
        %1526 = vmatpush.msra.mxu0 %v1423
        %1527 = vmatpush.msra.mxu0 %v1420
        %1528 = vmatpush.msra.mxu0 %v1417
        %1529 = vmatpush.msra.mxu0 %v1414
        %1530 = vmatpush.msra.mxu0 %v1411
        %1531 = vmatpush.msra.mxu0 %v1408
        %1532 = vmatpush.msra.mxu0 %v1405
        %1533 = vmatpush.msra.mxu0 %v1402
        %1534 = vmatpush.msra.mxu0 %v1399
        %1535 = vmatpush.msra.mxu0 %v1396
        %1536 = vmatmul.f32.gmra.mxu0 %v1346
        %v1537 = vpop.f32.mrf.mxu0
        %v1538 = vadd.f32 %v1518, %v1537
        %1539 = vdwg.mxu0
        %1540 = vmatpush.msra.mxu0 %v1489
        %1541 = vmatpush.msra.mxu0 %v1486
        %1542 = vmatpush.msra.mxu0 %v1483
        %1543 = vmatpush.msra.mxu0 %v1480
        %1544 = vmatpush.msra.mxu0 %v1477
        %1545 = vmatpush.msra.mxu0 %v1474
        %1546 = vmatpush.msra.mxu0 %v1471
        %1547 = vmatpush.msra.mxu0 %v1468
        %1548 = vmatpush.msra.mxu0 %v1465
        %1549 = vmatpush.msra.mxu0 %v1462
        %1550 = vmatpush.msra.mxu0 %v1459
        %1551 = vmatpush.msra.mxu0 %v1456
        %1552 = vmatpush.msra.mxu0 %v1453
        %1553 = vmatpush.msra.mxu0 %v1450
        %1554 = vmatpush.msra.mxu0 %v1447
        %1555 = vmatpush.msra.mxu0 %v1444
        %1556 = vmatmul.f32.gmra.mxu0 %v1347
        %v1557 = vpop.f32.mrf.mxu0
        %v1558 = vadd.f32 %v1538, %v1557
        %1559 = vdwg.mxu0
        %1560 = vmatpush.msra.mxu0 %v1394
        %1561 = vmatpush.msra.mxu0 %v1391
        %1562 = vmatpush.msra.mxu0 %v1388
        %1563 = vmatpush.msra.mxu0 %v1385
        %1564 = vmatpush.msra.mxu0 %v1382
        %1565 = vmatpush.msra.mxu0 %v1379
        %1566 = vmatpush.msra.mxu0 %v1376
        %1567 = vmatpush.msra.mxu0 %v1373
        %1568 = vmatpush.msra.mxu0 %v1370
        %1569 = vmatpush.msra.mxu0 %v1367
        %1570 = vmatpush.msra.mxu0 %v1364
        %1571 = vmatpush.msra.mxu0 %v1361
        %1572 = vmatpush.msra.mxu0 %v1358
        %1573 = vmatpush.msra.mxu0 %v1355
        %1574 = vmatpush.msra.mxu0 %v1352
        %1575 = vmatpush.msra.mxu0 %v1349
        %1576 = vmatmul.f32.gmra.mxu0 %v1345
        %v1577 = vpop.f32.mrf.mxu0
        %v1578 = vadd.f32 %v1495, %v1577
        %1579 = vdwg.mxu0
        %1580 = vmatpush.msra.mxu0 %v1442
        %1581 = vmatpush.msra.mxu0 %v1439
        %1582 = vmatpush.msra.mxu0 %v1436
        %1583 = vmatpush.msra.mxu0 %v1433
        %1584 = vmatpush.msra.mxu0 %v1430
        %1585 = vmatpush.msra.mxu0 %v1427
        %1586 = vmatpush.msra.mxu0 %v1424
        %1587 = vmatpush.msra.mxu0 %v1421
        %1588 = vmatpush.msra.mxu0 %v1418
        %1589 = vmatpush.msra.mxu0 %v1415
        %1590 = vmatpush.msra.mxu0 %v1412
        %1591 = vmatpush.msra.mxu0 %v1409
        %1592 = vmatpush.msra.mxu0 %v1406
        %1593 = vmatpush.msra.mxu0 %v1403
        %1594 = vmatpush.msra.mxu0 %v1400
        %1595 = vmatpush.msra.mxu0 %v1397
        %1596 = vmatmul.f32.gmra.mxu0 %v1346
        %v1597 = vpop.f32.mrf.mxu0
        %v1598 = vadd.f32 %v1578, %v1597
        %1599 = vdwg.mxu0
        %1600 = vmatpush.msra.mxu0 %v1490
        %1601 = vmatpush.msra.mxu0 %v1487
        %1602 = vmatpush.msra.mxu0 %v1484
        %1603 = vmatpush.msra.mxu0 %v1481
        %1604 = vmatpush.msra.mxu0 %v1478
        %1605 = vmatpush.msra.mxu0 %v1475
        %1606 = vmatpush.msra.mxu0 %v1472
        %1607 = vmatpush.msra.mxu0 %v1469
        %1608 = vmatpush.msra.mxu0 %v1466
        %1609 = vmatpush.msra.mxu0 %v1463
        %1610 = vmatpush.msra.mxu0 %v1460
        %1611 = vmatpush.msra.mxu0 %v1457
        %1612 = vmatpush.msra.mxu0 %v1454
        %1613 = vmatpush.msra.mxu0 %v1451
        %1614 = vmatpush.msra.mxu0 %v1448
        %1615 = vmatpush.msra.mxu0 %v1445
        %1616 = vmatmul.f32.gmra.mxu0 %v1347
        %v1617 = vpop.f32.mrf.mxu0
        %v1618 = vadd.f32 %v1598, %v1617
        %1619 = vdwg.mxu0
        %1620 = vmatpush.msra.mxu0 %v1395
        %1621 = vmatpush.msra.mxu0 %v1392
        %1622 = vmatpush.msra.mxu0 %v1389
        %1623 = vmatpush.msra.mxu0 %v1386
        %1624 = vmatpush.msra.mxu0 %v1383
        %1625 = vmatpush.msra.mxu0 %v1380
        %1626 = vmatpush.msra.mxu0 %v1377
        %1627 = vmatpush.msra.mxu0 %v1374
        %1628 = vmatpush.msra.mxu0 %v1371
        %1629 = vmatpush.msra.mxu0 %v1368
        %1630 = vmatpush.msra.mxu0 %v1365
        %1631 = vmatpush.msra.mxu0 %v1362
        %1632 = vmatpush.msra.mxu0 %v1359
        %1633 = vmatpush.msra.mxu0 %v1356
        %1634 = vmatpush.msra.mxu0 %v1353
        %1635 = vmatpush.msra.mxu0 %v1350
        %1636 = vmatmul.f32.gmra.mxu0 %v1345
        %v1637 = vpop.f32.mrf.mxu0
        %v1638 = vadd.f32 %v1496, %v1637
        %1639 = vdwg.mxu0
        %1640 = vmatpush.msra.mxu0 %v1443
        %1641 = vmatpush.msra.mxu0 %v1440
        %1642 = vmatpush.msra.mxu0 %v1437
        %1643 = vmatpush.msra.mxu0 %v1434
        %1644 = vmatpush.msra.mxu0 %v1431
        %1645 = vmatpush.msra.mxu0 %v1428
        %1646 = vmatpush.msra.mxu0 %v1425
        %1647 = vmatpush.msra.mxu0 %v1422
        %1648 = vmatpush.msra.mxu0 %v1419
        %1649 = vmatpush.msra.mxu0 %v1416
        %1650 = vmatpush.msra.mxu0 %v1413
        %1651 = vmatpush.msra.mxu0 %v1410
        %1652 = vmatpush.msra.mxu0 %v1407
        %1653 = vmatpush.msra.mxu0 %v1404
        %1654 = vmatpush.msra.mxu0 %v1401
        %1655 = vmatpush.msra.mxu0 %v1398
        %1656 = vmatmul.f32.gmra.mxu0 %v1346
        %v1657 = vpop.f32.mrf.mxu0
        %v1658 = vadd.f32 %v1638, %v1657
        %1659 = vdwg.mxu0
        %1660 = vmatpush.msra.mxu0 %v1491
        %1661 = vmatpush.msra.mxu0 %v1488
        %1662 = vmatpush.msra.mxu0 %v1485
        %1663 = vmatpush.msra.mxu0 %v1482
        %1664 = vmatpush.msra.mxu0 %v1479
        %1665 = vmatpush.msra.mxu0 %v1476
        %1666 = vmatpush.msra.mxu0 %v1473
        %1667 = vmatpush.msra.mxu0 %v1470
        %1668 = vmatpush.msra.mxu0 %v1467
        %1669 = vmatpush.msra.mxu0 %v1464
        %1670 = vmatpush.msra.mxu0 %v1461
        %1671 = vmatpush.msra.mxu0 %v1458
        %1672 = vmatpush.msra.mxu0 %v1455
        %1673 = vmatpush.msra.mxu0 %v1452
        %1674 = vmatpush.msra.mxu0 %v1449
        %1675 = vmatpush.msra.mxu0 %v1446
        %1676 = vmatmul.f32.gmra.mxu0 %v1347
        %v1677 = vpop.f32.mrf.mxu0
        %v1678 = vadd.f32 %v1658, %v1677
        %1679 = vdwg.mxu0
        %1680 = vst [vmem:[%s292] sm:$0xff] %v1558
        %1681 = vst [vmem:[%s292 + $0x8] sm:$0xff] %v1618
        %1682 = vst [vmem:[%s292 + $0x10] sm:$0xff] %v1678
        %s1683 = sand.u32 %s142, 1
        %s1684 = scalar_lea.sflag [#allocation4], %s1683
        %s1685 = sand.u32 %s142, 1
        %s1686 = smul.addr %s1685, 24
        %s1687 = scalar_lea.vmem [#allocation10], %s1686
        // Predicated region
        $region57: #{tpu_custom_call.1} parent=39 // pred_check
          %p1688 = pneg %p152
        $region58: #{tpu_custom_call.1} parent=39 // pred_check_branch
          %1690 = sbr.rel (%p1688) target = $region60
        $region59: #{tpu_custom_call.1} parent=39 // pred_region
          %1692 = vsyncadd %s1684, 0
          %s1693 = smul.addr %s24, 3
          %s1694 = smul.addr %s1693, 8
          %s1695 = scalar_lea.hbm %s5, %s1694
          %s1697 = sshll.u32 %s1687, 4
          %s1698 = int_to_ptr.vmem [resolvable:$true] %s1697
          %s1699 = sshll.u32 %s1695, 4
          %s1700 = int_to_ptr.hbm [resolvable:$true] %s1699
          %1702 = dma.vmem_to_hbm [thread:$0]  %s1698, 384, %s1700, %s1684
        $region60: #{tpu_custom_call.1} parent=39 // pred_fallthru
          _
      $region40: #{tpu_custom_call.1} parent=5 // pred_fallthru
        _
      %p1703 = scmp.le.s32.totalorder 2, %s19
      // Predicated region
      $region61: #{tpu_custom_call.1} parent=5 // pred_check
        %p1704 = pneg %p1703
      $region62: #{tpu_custom_call.1} parent=5 // pred_check_branch
        %1706 = sbr.rel (%p1704) target = $region64
      $region63: #{tpu_custom_call.1} parent=5 // pred_region
        %s1707 = ssub.s32 %s19, 2
        // Predicated region
        $region65: #{tpu_custom_call.1} parent=63 // pred_check
          %p1708 = pneg %p158
        $region66: #{tpu_custom_call.1} parent=63 // pred_check_branch
          %1710 = sbr.rel (%p1708) target = $region68
        $region67: #{tpu_custom_call.1} parent=63 // pred_region
          %s1711 = sand.u32 %s143, 1
          %s1712 = scalar_lea.sflag [#allocation4], %s1711
          %s1713 = sand.u32 %s143, 1
          %s1714 = smul.addr %s1713, 24
          %s1715 = scalar_lea.vmem [#allocation10], %s1714
          %1717 = dma.done %s1712, 384
        $region68: #{tpu_custom_call.1} parent=63 // pred_fallthru
          _
      $region64: #{tpu_custom_call.1} parent=5 // pred_fallthru
        _
    $region6: #{tpu_custom_call.1} parent=1 // loop_footer
      %s23 = sadd.s32 1, %s19
    $region7: #{tpu_custom_call.1} parent=1 // loop_footer_branch
      %18 = sbr.rel target = $region3
    $region8: #{tpu_custom_call.1} parent=1 // loop_exit
      _
    %1718 = vsyncpa [#allocation3], 1
    %s1719 = scalar_lea.sflag [#allocation3], 1
    %1720 = vsyncpa %s1719, 1
    %1721 = vsyncpa [#allocation6], 1
    %1722 = vsyncpa [#allocation9], 1
    %1723 = vsyncpa [#allocation4], 1
    %s1724 = scalar_lea.sflag [#allocation4], 1
    %1725 = vsyncpa %s1724, 1

</llo_original>
